<compile_context>
chip_gen: v7x
topology: tpu7x:2x2x1
jax: 0.10.0
libtpu: 0.0.40
codegen_flags: <defaults>
</compile_context>

<pallas_src>
import functools
import math

import jax
import jax.numpy as jnp
import numpy as np
from jax.experimental import pallas as pl
from jax.experimental.pallas import tpu as pltpu


def _round_up(x, m):
    return ((x + m - 1) // m) * m


_LANES = 128
_CHUNK_ROWS = 8                       # 8 sublane rows x 128 lanes = 1024 points / chunk
_CHUNK_PTS = _CHUNK_ROWS * _LANES


# ---------------------------------------------------------------------------
# Shared binning math (used verbatim by the kernel and the pure-JAX reference,
# so they agree bit-for-bit).  Division-free: every threshold test is a
# multiply + compare; only two sqrts remain.
#
# TODO(synk): exact `common.xyz2spherical` source is unavailable; the standard
# convention (r; azimuth in [0, 2*pi) CCW from +x; inclination in [0, pi] from
# +z) is assumed.  Threshold counting == floor(angle/step) away from exact
# (measure-zero) bin boundaries.
# ---------------------------------------------------------------------------
def _spherical_bins(x, y, z, des_r, rad_n, azi_n, ele_n):
    r = jnp.sqrt(x * x + y * y + z * z)
    rho = jnp.sqrt(x * x + y * y)
    step = float(des_r) / float(rad_n)

    # radial bin: count of thresholds r >= k*step  (== floor(r/step) a.e.)
    rad_bin = jnp.zeros(x.shape, jnp.int32)
    for k in range(1, rad_n + 1):
        rad_bin = rad_bin + (r >= k * step).astype(jnp.int32)

    # elevation bin: count of k with cos(theta) = z/r <= cos(k*pi/ele_n), via z <= c_k*r
    ele_bin = jnp.zeros(x.shape, jnp.int32)
    for k in range(1, ele_n + 1):
        ele_bin = ele_bin + (z <= math.cos(math.pi * k / ele_n) * r).astype(jnp.int32)

    # azimuth bin: count of boundary rays theta_k = 2*pi*k/azi_n passed (CCW from +x)
    y_neg = y < 0.0
    azi_bin = jnp.zeros(x.shape, jnp.int32)
    for k in range(1, azi_n):
        c_k = math.cos(2.0 * math.pi * k / azi_n)
        if 2 * k <= azi_n:                       # boundary angle <= pi
            p_k = jnp.logical_or(y_neg, x <= c_k * rho)
        else:                                    # boundary angle > pi
            p_k = jnp.logical_and(y_neg, x >= c_k * rho)
        azi_bin = azi_bin + p_k.astype(jnp.int32)

    # points outside the descriptor radius / exactly at elevation == pi never match
    valid = jnp.logical_and(rad_bin < rad_n, ele_bin < ele_n)
    return rad_bin, azi_bin, ele_bin, valid


# ---------------------------------------------------------------------------
# Pallas kernel: fused spherical conversion + voxel-occupancy histogram.
# ---------------------------------------------------------------------------
def _shot_space_kernel(pts_ref, out_ref, *, des_r, rad_n, azi_n, ele_n):
    # pts_ref: (3, tile_rows, 128) f32   (points laid out on sublanes x lanes)
    # out_ref: (1, vpad) int32, resident across grid axis 2 (the reduction axis).
    i = pl.program_id(2)

    @pl.when(i == 0)
    def _init():
        out_ref[...] = jnp.zeros_like(out_ref)

    vpad = out_ref.shape[-1]
    tile_rows = pts_ref.shape[1]
    n_chunks = tile_rows // _CHUNK_ROWS

    # hoisted constants (broadcasts are not CSE'd -> create once)
    vox = jax.lax.broadcasted_iota(jnp.int32, (1, 1, vpad), 2)     # voxel ids on lanes
    ones_row = jnp.ones((1, _LANES), jnp.bfloat16)                 # MXU reduction lhs

    def chunk_body(c, acc):
        r0 = pl.multiple_of(c * _CHUNK_ROWS, _CHUNK_ROWS)
        xyz = pts_ref[:, pl.ds(r0, _CHUNK_ROWS), :]                # (3, 8, 128)
        x, y, z = xyz[0], xyz[1], xyz[2]                           # full (8,128) vregs

        rad_b, azi_b, ele_b, valid = _spherical_bins(
            x, y, z, des_r, rad_n, azi_n, ele_n)
        pos = rad_b * (azi_n * ele_n) + azi_b * ele_n + ele_b      # (8,128) int32
        pos = jnp.where(valid, pos, -1)                            # -1 never matches a voxel

        # one-hot + point reduction on the MXU, 128 points at a time so the bf16
        # one-hot live set stays at ~8*vpad/128 vregs (no spills).
        for s in range(_CHUNK_ROWS):
            ps = pos[s:s + 1, :]                                   # (1, 128) static slice
            onehot = (ps[:, :, None] == vox).astype(jnp.bfloat16)  # (1, 128, vpad)
            acc = acc + jnp.dot(ones_row, onehot.reshape(_LANES, vpad),
                                preferred_element_type=jnp.float32)   # (1, vpad) f32
        return acc

    acc = jax.lax.fori_loop(0, n_chunks, chunk_body,
                            jnp.zeros((1, vpad), jnp.float32))
    # per-tile partial counts (<= tile_n) are exact in f32; total stays exact in int32
    out_ref[...] += acc.astype(jnp.int32)


def spherical_voxelization_pallas(points, des_r, rad_n, azi_n, ele_n, *,
                                  tile_cap=32768, n_splits=None):
    """points: (B, N, 3) float32 xyz. Returns (B, 1, rad_n, azi_n, ele_n) int32."""
    B, N, C = points.shape
    assert C == 3
    V = rad_n * azi_n * ele_n
    vpad = _round_up(V, _LANES)                    # lane-dense voxel axis

    tile_cap = max(_CHUNK_PTS, (int(tile_cap) // _CHUNK_PTS) * _CHUNK_PTS)
    tile_n = min(_round_up(N, _CHUNK_PTS), tile_cap)
    tile_rows = tile_n // _LANES
    n_tiles = -(-N // tile_n)

    if n_splits is None:                           # give the 2nd v7x TensorCore work when B == 1
        n_splits = 2 if (B == 1 and n_tiles >= 2) else 1
    n_tiles = _round_up(n_tiles, n_splits)
    tiles_per_split = n_tiles // n_splits
    n_pad = n_tiles * tile_n

    # Single relayout pass: pad (fused) -> free reshape -> one transpose.
    # Padded points get a sentinel with r >= des_r so they never hit a valid voxel.
    pts = points.astype(jnp.float32)
    if n_pad != N:
        pts = jnp.pad(pts, ((0, 0), (0, n_pad - N), (0, 0)),
                      constant_values=2.0 * float(des_r) + 1.0)
    pts = pts.reshape(B, n_pad // _LANES, _LANES, 3).transpose(0, 3, 1, 2)  # (B,3,rows,128)

    kernel = functools.partial(
        _shot_space_kernel, des_r=float(des_r),
        rad_n=int(rad_n), azi_n=int(azi_n), ele_n=int(ele_n))

    out = pl.pallas_call(
        kernel,
        out_shape=jax.ShapeDtypeStruct((n_splits, B, 1, vpad), jnp.int32),
        grid_spec=pltpu.PrefetchScalarGridSpec(
            num_scalar_prefetch=0,
            grid=(n_splits, B, tiles_per_split),
            in_specs=[pl.BlockSpec(
                (None, 3, tile_rows, _LANES),
                lambda s, b, i: (b, 0, s * tiles_per_split + i, 0))],
            out_specs=pl.BlockSpec(
                (None, None, 1, vpad),
                lambda s, b, i: (s, b, 0, 0)),
        ),
        compiler_params=pltpu.CompilerParams(
            dimension_semantics=("parallel", "parallel", "arbitrary")),
    )(pts)

    hist = out[0] if n_splits == 1 else jnp.sum(out, axis=0)        # (B, 1, vpad)
    return hist[:, 0, :V].reshape(B, 1, rad_n, azi_n, ele_n)


# ---------------------------------------------------------------------------
# Optional MSF head (pure slicing/adds/concat -> plain JAX glue).
# ---------------------------------------------------------------------------
def multiscale_shot(feature):
    f1 = feature[:, :, 0:5, :, :]
    f2 = feature[:, :, 0:10:2, :, :] + feature[:, :, 1:10:2, :, :]
    f3 = (feature[:, :, 0:15:3, :, :] + feature[:, :, 1:15:3, :, :]
          + feature[:, :, 2:15:3, :, :])
    return jnp.concatenate((f1, f2, f3), axis=1)


class SphericalVoxelization:
    def __init__(self, des_r, rad_n, azi_n, ele_n, use_interpolation=True, use_MSF=False):
        self.des_r = des_r
        self.rad_n = rad_n
        self.azi_n = azi_n
        self.ele_n = ele_n
        self.use_interpolation = use_interpolation
        self.use_MSF = use_MSF

    def __call__(self, points):
        if self.use_interpolation:
            # TODO(synk): get_SHOT_space_inter relies on data-dependent boolean-masked
            # in-place assignments whose LHS/RHS element counts only line up for
            # particular inputs; not translated (use_interpolation=False path is exact).
            raise NotImplementedError("interpolated SHOT space not translated")
        x = spherical_voxelization_pallas(
            points, self.des_r, self.rad_n, self.azi_n, self.ele_n)
        if self.use_MSF:
            x = multiscale_shot(x)
        return x


# ---------------------------------------------------------------------------
# Pure-JAX reference (same binning math, independent scatter-add histogram).
# ---------------------------------------------------------------------------
def reference_get_SHOT_space(points, des_r, rad_n, azi_n, ele_n):
    points = points.astype(jnp.float32)
    x, y, z = points[..., 0], points[..., 1], points[..., 2]
    rad_b, azi_b, ele_b, valid = _spherical_bins(x, y, z, des_r, rad_n, azi_n, ele_n)
    V = rad_n * azi_n * ele_n
    pos = rad_b * (azi_n * ele_n) + azi_b * ele_n + ele_b
    pos = jnp.where(valid, pos, V)                                  # invalid -> overflow bin
    B = points.shape[0]
    hist = jax.vmap(lambda p: jnp.zeros((V + 1,), jnp.int32).at[p].add(1))(pos)
    return hist[:, :V].reshape(B, 1, rad_n, azi_n, ele_n)


if __name__ == "__main__":
    key = jax.random.PRNGKey(0)

    # Case 1: nominal shapes, all points inside the descriptor radius.
    B, N = 2, 256
    des_r, rad_n, azi_n, ele_n = 1.0, 3, 8, 2
    points = jax.random.uniform(key, (B, N, 3), jnp.float32, minval=-0.5, maxval=0.5)
    model = SphericalVoxelization(des_r, rad_n, azi_n, ele_n,
                                  use_interpolation=False, use_MSF=False)
    out = jax.block_until_ready(model(points))
    ref = jax.block_until_ready(
        reference_get_SHOT_space(points, des_r, rad_n, azi_n, ele_n))
    assert out.shape == (B, 1, rad_n, azi_n, ele_n), out.shape
    assert out.dtype == jnp.int32
    np.testing.assert_array_equal(np.asarray(out), np.asarray(ref))

    # Case 2: ragged N + out-of-range points (exercises sentinel padding).
    pts2 = jax.random.uniform(jax.random.PRNGKey(1), (1, 200, 3), jnp.float32,
                              minval=-1.0, maxval=1.0)
    out2 = jax.block_until_ready(spherical_voxelization_pallas(pts2, 0.8, 4, 6, 3))
    ref2 = jax.block_until_ready(reference_get_SHOT_space(pts2, 0.8, 4, 6, 3))
    np.testing.assert_array_equal(np.asarray(out2), np.asarray(ref2))

    # Case 3: multi-tile reduction + N split across two parallel grid slots
    # (covers the resident-accumulator path and the v7x megacore split).
    pts3 = jax.random.uniform(jax.random.PRNGKey(2), (1, 2500, 3), jnp.float32,
                              minval=-1.0, maxval=1.0)
    out3 = jax.block_until_ready(
        spherical_voxelization_pallas(pts3, 0.9, 2, 8, 2, tile_cap=1024))
    ref3 = jax.block_until_ready(reference_get_SHOT_space(pts3, 0.9, 2, 8, 2))
    np.testing.assert_array_equal(np.asarray(out3), np.asarray(ref3))

    # Case 4: MSF head (rad_n = 15 -> V = 240 -> two 128-lane voxel tiles).
    pts4 = jax.random.uniform(jax.random.PRNGKey(3), (1, 300, 3), jnp.float32,
                              minval=-0.6, maxval=0.6)
    model4 = SphericalVoxelization(1.0, 15, 8, 2, use_interpolation=False, use_MSF=True)
    out4 = jax.block_until_ready(model4(pts4))
    ref4 = jax.block_until_ready(
        multiscale_shot(reference_get_SHOT_space(pts4, 1.0, 15, 8, 2)))
    assert out4.shape == (1, 3, 5, 8, 2), out4.shape
    np.testing.assert_array_equal(np.asarray(out4), np.asarray(ref4))

    print("KERNEL_OK")
</pallas_src>

<mosaic_0001>
module attributes {stable_mosaic.version = 11 : i64} {
  func.func @_shot_space_kernel(%arg0: i32, %arg1: i32, %arg2: i32, %arg3: memref<1x3x8x128xf32, #tpu.memory_space<vmem>>, %arg4: memref<1x1x1x128xi32, #tpu.memory_space<vmem>>) attributes {dimension_semantics = [#tpu.dimension_semantics<parallel>, #tpu.dimension_semantics<parallel>, #tpu.dimension_semantics<arbitrary>], iteration_bounds = array<i64: 1, 2, 1>, scalar_prefetch = 0 : i64, scratch_operands = 0 : i64, tpu.core_type = #tpu.core_type<tc>, window_params = [{transform_indices = @transform_0, window_bounds = array<i64: 1, 3, 8, 128>}, {transform_indices = @transform_1, window_bounds = array<i64: 1, 1, 1, 128>}]} {
    %c0_i32 = arith.constant 0 : i32
    %0 = arith.cmpi eq, %arg2, %c0_i32 : i32
    %1 = arith.extui %0 : i1 to i32
    %c0_i32_0 = arith.constant 0 : i32
    %2 = arith.cmpi ne, %1, %c0_i32_0 : i32
    scf.if %2 {
      %c0_i32_38 = arith.constant 0 : i32
      %204 = vector.broadcast %c0_i32_38 : i32 to vector<1x128xi32>
      %c0_39 = arith.constant 0 : index
      %c0_40 = arith.constant 0 : index
      %c0_41 = arith.constant 0 : index
      %c0_42 = arith.constant 0 : index
      %205 = vector.load %arg4[%c0_39, %c0_40, %c0_41, %c0_42] : memref<1x1x1x128xi32, #tpu.memory_space<vmem>>, vector<1x1x1x128xi32>
      %206 = vector.shape_cast %205 : vector<1x1x1x128xi32> to vector<1x128xi32>
      %207 = vector.shape_cast %204 : vector<1x128xi32> to vector<1x1x1x128xi32>
      tpu.vector_store %arg4[%c0_39, %c0_40, %c0_41, %c0_42], %207 {strides = array<i32>} : memref<1x1x1x128xi32, #tpu.memory_space<vmem>>, vector<1x1x1x128xi32>,
    } else {
    }
    %3 = tpu.iota {dimensions = array<i32: 2>} : vector<1x1x128xi32>
    %cst = arith.constant 1.000000e+00 : bf16
    %4 = vector.broadcast %cst : bf16 to vector<1x128xbf16>
    %cst_1 = arith.constant 0.000000e+00 : f32
    %5 = vector.broadcast %cst_1 : f32 to vector<1x128xf32>
    %c0_i32_2 = arith.constant 0 : i32
    %c8_i32 = arith.constant 8 : i32
    %6 = arith.muli %c0_i32_2, %c8_i32 : i32
    %7 = tpu.assume_multiple %6, 8 : i32
    %c0 = arith.constant 0 : index
    %c0_3 = arith.constant 0 : index
    %8 = arith.index_cast %7 : i32 to index
    %c0_4 = arith.constant 0 : index
    %9 = vector.load %arg3[%c0, %c0_3, %8, %c0_4] : memref<1x3x8x128xf32, #tpu.memory_space<vmem>>, vector<1x3x8x128xf32>
    %10 = vector.shape_cast %9 : vector<1x3x8x128xf32> to vector<3x8x128xf32>
    %11 = vector.extract_strided_slice %10 {offsets = [0, 0, 0], sizes = [1, 8, 128], strides = [1, 1, 1]} : vector<3x8x128xf32> to vector<1x8x128xf32>
    %12 = vector.shape_cast %11 : vector<1x8x128xf32> to vector<8x128xf32>
    %13 = vector.extract_strided_slice %10 {offsets = [1, 0, 0], sizes = [1, 8, 128], strides = [1, 1, 1]} : vector<3x8x128xf32> to vector<1x8x128xf32>
    %14 = vector.shape_cast %13 : vector<1x8x128xf32> to vector<8x128xf32>
    %15 = vector.extract_strided_slice %10 {offsets = [2, 0, 0], sizes = [1, 8, 128], strides = [1, 1, 1]} : vector<3x8x128xf32> to vector<1x8x128xf32>
    %16 = vector.shape_cast %15 : vector<1x8x128xf32> to vector<8x128xf32>
    %17 = arith.mulf %12, %12 : vector<8x128xf32>
    %18 = arith.mulf %14, %14 : vector<8x128xf32>
    %19 = arith.addf %17, %18 : vector<8x128xf32>
    %20 = arith.mulf %16, %16 : vector<8x128xf32>
    %21 = arith.addf %19, %20 : vector<8x128xf32>
    %22 = math.sqrt %21 : vector<8x128xf32>
    %23 = arith.mulf %12, %12 : vector<8x128xf32>
    %24 = arith.mulf %14, %14 : vector<8x128xf32>
    %25 = arith.addf %23, %24 : vector<8x128xf32>
    %26 = math.sqrt %25 : vector<8x128xf32>
    %c0_i32_5 = arith.constant 0 : i32
    %27 = vector.broadcast %c0_i32_5 : i32 to vector<8x128xi32>
    %cst_6 = arith.constant 0.333333343 : f32
    %28 = vector.broadcast %cst_6 : f32 to vector<8x128xf32>
    %29 = arith.cmpf oge, %22, %28 : vector<8x128xf32>
    %30 = arith.extui %29 : vector<8x128xi1> to vector<8x128xi32>
    %31 = arith.addi %27, %30 : vector<8x128xi32>
    %cst_7 = arith.constant 0.666666686 : f32
    %32 = vector.broadcast %cst_7 : f32 to vector<8x128xf32>
    %33 = arith.cmpf oge, %22, %32 : vector<8x128xf32>
    %34 = arith.extui %33 : vector<8x128xi1> to vector<8x128xi32>
    %35 = arith.addi %31, %34 : vector<8x128xi32>
    %cst_8 = arith.constant 1.000000e+00 : f32
    %36 = vector.broadcast %cst_8 : f32 to vector<8x128xf32>
    %37 = arith.cmpf oge, %22, %36 : vector<8x128xf32>
    %38 = arith.extui %37 : vector<8x128xi1> to vector<8x128xi32>
    %39 = arith.addi %35, %38 : vector<8x128xi32>
    %c0_i32_9 = arith.constant 0 : i32
    %40 = vector.broadcast %c0_i32_9 : i32 to vector<8x128xi32>
    %cst_10 = arith.constant 6.12323426E-17 : f32
    %41 = vector.broadcast %cst_10 : f32 to vector<8x128xf32>
    %42 = arith.mulf %41, %22 : vector<8x128xf32>
    %43 = arith.cmpf ole, %16, %42 : vector<8x128xf32>
    %44 = arith.extui %43 : vector<8x128xi1> to vector<8x128xi32>
    %45 = arith.addi %40, %44 : vector<8x128xi32>
    %cst_11 = arith.constant -1.000000e+00 : f32
    %46 = vector.broadcast %cst_11 : f32 to vector<8x128xf32>
    %47 = arith.mulf %46, %22 : vector<8x128xf32>
    %48 = arith.cmpf ole, %16, %47 : vector<8x128xf32>
    %49 = arith.extui %48 : vector<8x128xi1> to vector<8x128xi32>
    %50 = arith.addi %45, %49 : vector<8x128xi32>
    %cst_12 = arith.constant 0.000000e+00 : f32
    %51 = vector.broadcast %cst_12 : f32 to vector<8x128xf32>
    %52 = arith.cmpf olt, %14, %51 : vector<8x128xf32>
    %c0_i32_13 = arith.constant 0 : i32
    %53 = vector.broadcast %c0_i32_13 : i32 to vector<8x128xi32>
    %cst_14 = arith.constant 0.707106769 : f32
    %54 = vector.broadcast %cst_14 : f32 to vector<8x128xf32>
    %55 = arith.mulf %54, %26 : vector<8x128xf32>
    %56 = arith.cmpf ole, %12, %55 : vector<8x128xf32>
    %57 = arith.ori %52, %56 : vector<8x128xi1>
    %58 = arith.extui %57 : vector<8x128xi1> to vector<8x128xi32>
    %59 = arith.addi %53, %58 : vector<8x128xi32>
    %cst_15 = arith.constant 6.12323426E-17 : f32
    %60 = vector.broadcast %cst_15 : f32 to vector<8x128xf32>
    %61 = arith.mulf %60, %26 : vector<8x128xf32>
    %62 = arith.cmpf ole, %12, %61 : vector<8x128xf32>
    %63 = arith.ori %52, %62 : vector<8x128xi1>
    %64 = arith.extui %63 : vector<8x128xi1> to vector<8x128xi32>
    %65 = arith.addi %59, %64 : vector<8x128xi32>
    %cst_16 = arith.constant -0.707106769 : f32
    %66 = vector.broadcast %cst_16 : f32 to vector<8x128xf32>
    %67 = arith.mulf %66, %26 : vector<8x128xf32>
    %68 = arith.cmpf ole, %12, %67 : vector<8x128xf32>
    %69 = arith.ori %52, %68 : vector<8x128xi1>
    %70 = arith.extui %69 : vector<8x128xi1> to vector<8x128xi32>
    %71 = arith.addi %65, %70 : vector<8x128xi32>
    %cst_17 = arith.constant -1.000000e+00 : f32
    %72 = vector.broadcast %cst_17 : f32 to vector<8x128xf32>
    %73 = arith.mulf %72, %26 : vector<8x128xf32>
    %74 = arith.cmpf ole, %12, %73 : vector<8x128xf32>
    %75 = arith.ori %52, %74 : vector<8x128xi1>
    %76 = arith.extui %75 : vector<8x128xi1> to vector<8x128xi32>
    %77 = arith.addi %71, %76 : vector<8x128xi32>
    %cst_18 = arith.constant -0.707106769 : f32
    %78 = vector.broadcast %cst_18 : f32 to vector<8x128xf32>
    %79 = arith.mulf %78, %26 : vector<8x128xf32>
    %80 = arith.cmpf oge, %12, %79 : vector<8x128xf32>
    %81 = arith.andi %52, %80 : vector<8x128xi1>
    %82 = arith.extui %81 : vector<8x128xi1> to vector<8x128xi32>
    %83 = arith.addi %77, %82 : vector<8x128xi32>
    %cst_19 = arith.constant -1.83697015E-16 : f32
    %84 = vector.broadcast %cst_19 : f32 to vector<8x128xf32>
    %85 = arith.mulf %84, %26 : vector<8x128xf32>
    %86 = arith.cmpf oge, %12, %85 : vector<8x128xf32>
    %87 = arith.andi %52, %86 : vector<8x128xi1>
    %88 = arith.extui %87 : vector<8x128xi1> to vector<8x128xi32>
    %89 = arith.addi %83, %88 : vector<8x128xi32>
    %cst_20 = arith.constant 0.707106769 : f32
    %90 = vector.broadcast %cst_20 : f32 to vector<8x128xf32>
    %91 = arith.mulf %90, %26 : vector<8x128xf32>
    %92 = arith.cmpf oge, %12, %91 : vector<8x128xf32>
    %93 = arith.andi %52, %92 : vector<8x128xi1>
    %94 = arith.extui %93 : vector<8x128xi1> to vector<8x128xi32>
    %95 = arith.addi %89, %94 : vector<8x128xi32>
    %c3_i32 = arith.constant 3 : i32
    %96 = vector.broadcast %c3_i32 : i32 to vector<8x128xi32>
    %97 = arith.cmpi slt, %39, %96 : vector<8x128xi32>
    %c2_i32 = arith.constant 2 : i32
    %98 = vector.broadcast %c2_i32 : i32 to vector<8x128xi32>
    %99 = arith.cmpi slt, %50, %98 : vector<8x128xi32>
    %100 = arith.andi %97, %99 : vector<8x128xi1>
    %c16_i32 = arith.constant 16 : i32
    %101 = vector.broadcast %c16_i32 : i32 to vector<8x128xi32>
    %102 = arith.muli %39, %101 : vector<8x128xi32>
    %c2_i32_21 = arith.constant 2 : i32
    %103 = vector.broadcast %c2_i32_21 : i32 to vector<8x128xi32>
    %104 = arith.muli %95, %103 : vector<8x128xi32>
    %105 = arith.addi %102, %104 : vector<8x128xi32>
    %106 = arith.addi %105, %50 : vector<8x128xi32>
    %c-1_i32 = arith.constant -1 : i32
    %107 = vector.broadcast %c-1_i32 : i32 to vector<8x128xi32>
    %108 = arith.select %100, %106, %107 : vector<8x128xi1>, vector<8x128xi32>
    %109 = vector.extract_strided_slice %108 {offsets = [0, 0], sizes = [1, 128], strides = [1, 1]} : vector<8x128xi32> to vector<1x128xi32>
    %110 = vector.shape_cast %109 : vector<1x128xi32> to vector<1x128x1xi32>
    %111 = vector.broadcast %110 : vector<1x128x1xi32> to vector<1x128x128xi32>
    %112 = vector.broadcast %3 : vector<1x1x128xi32> to vector<1x128x128xi32>
    %113 = arith.cmpi eq, %111, %112 : vector<1x128x128xi32>
    %114 = arith.extui %113 : vector<1x128x128xi1> to vector<1x128x128xi32>
    %115 = arith.sitofp %114 : vector<1x128x128xi32> to vector<1x128x128xf32>
    %116 = arith.truncf %115 : vector<1x128x128xf32> to vector<1x128x128xbf16>
    %117 = vector.shape_cast %116 : vector<1x128x128xbf16> to vector<128x128xbf16>
    %cst_22 = arith.constant dense<0.000000e+00> : vector<1x128xf32>
    %118 = tpu.matmul %4, %117, %cst_22 {dimension_numbers = #tpu.dot_dimension_numbers<[1], [0], [0], [1], [0, 0, 1, 1], [], []>} : vector<1x128xbf16>, vector<128x128xbf16>, vector<1x128xf32> -> vector<1x128xf32>
    %119 = arith.addf %5, %118 : vector<1x128xf32>
    %120 = vector.extract_strided_slice %108 {offsets = [1, 0], sizes = [1, 128], strides = [1, 1]} : vector<8x128xi32> to vector<1x128xi32>
    %121 = vector.shape_cast %120 : vector<1x128xi32> to vector<1x128x1xi32>
    %122 = vector.broadcast %121 : vector<1x128x1xi32> to vector<1x128x128xi32>
    %123 = vector.broadcast %3 : vector<1x1x128xi32> to vector<1x128x128xi32>
    %124 = arith.cmpi eq, %122, %123 : vector<1x128x128xi32>
    %125 = arith.extui %124 : vector<1x128x128xi1> to vector<1x128x128xi32>
    %126 = arith.sitofp %125 : vector<1x128x128xi32> to vector<1x128x128xf32>
    %127 = arith.truncf %126 : vector<1x128x128xf32> to vector<1x128x128xbf16>
    %128 = vector.shape_cast %127 : vector<1x128x128xbf16> to vector<128x128xbf16>
    %cst_23 = arith.constant dense<0.000000e+00> : vector<1x128xf32>
    %129 = tpu.matmul %4, %128, %cst_23 {dimension_numbers = #tpu.dot_dimension_numbers<[1], [0], [0], [1], [0, 0, 1, 1], [], []>} : vector<1x128xbf16>, vector<128x128xbf16>, vector<1x128xf32> -> vector<1x128xf32>
    %130 = arith.addf %119, %129 : vector<1x128xf32>
    %131 = vector.extract_strided_slice %108 {offsets = [2, 0], sizes = [1, 128], strides = [1, 1]} : vector<8x128xi32> to vector<1x128xi32>
    %132 = vector.shape_cast %131 : vector<1x128xi32> to vector<1x128x1xi32>
    %133 = vector.broadcast %132 : vector<1x128x1xi32> to vector<1x128x128xi32>
    %134 = vector.broadcast %3 : vector<1x1x128xi32> to vector<1x128x128xi32>
    %135 = arith.cmpi eq, %133, %134 : vector<1x128x128xi32>
    %136 = arith.extui %135 : vector<1x128x128xi1> to vector<1x128x128xi32>
    %137 = arith.sitofp %136 : vector<1x128x128xi32> to vector<1x128x128xf32>
    %138 = arith.truncf %137 : vector<1x128x128xf32> to vector<1x128x128xbf16>
    %139 = vector.shape_cast %138 : vector<1x128x128xbf16> to vector<128x128xbf16>
    %cst_24 = arith.constant dense<0.000000e+00> : vector<1x128xf32>
    %140 = tpu.matmul %4, %139, %cst_24 {dimension_numbers = #tpu.dot_dimension_numbers<[1], [0], [0], [1], [0, 0, 1, 1], [], []>} : vector<1x128xbf16>, vector<128x128xbf16>, vector<1x128xf32> -> vector<1x128xf32>
    %141 = arith.addf %130, %140 : vector<1x128xf32>
    %142 = vector.extract_strided_slice %108 {offsets = [3, 0], sizes = [1, 128], strides = [1, 1]} : vector<8x128xi32> to vector<1x128xi32>
    %143 = vector.shape_cast %142 : vector<1x128xi32> to vector<1x128x1xi32>
    %144 = vector.broadcast %143 : vector<1x128x1xi32> to vector<1x128x128xi32>
    %145 = vector.broadcast %3 : vector<1x1x128xi32> to vector<1x128x128xi32>
    %146 = arith.cmpi eq, %144, %145 : vector<1x128x128xi32>
    %147 = arith.extui %146 : vector<1x128x128xi1> to vector<1x128x128xi32>
    %148 = arith.sitofp %147 : vector<1x128x128xi32> to vector<1x128x128xf32>
    %149 = arith.truncf %148 : vector<1x128x128xf32> to vector<1x128x128xbf16>
    %150 = vector.shape_cast %149 : vector<1x128x128xbf16> to vector<128x128xbf16>
    %cst_25 = arith.constant dense<0.000000e+00> : vector<1x128xf32>
    %151 = tpu.matmul %4, %150, %cst_25 {dimension_numbers = #tpu.dot_dimension_numbers<[1], [0], [0], [1], [0, 0, 1, 1], [], []>} : vector<1x128xbf16>, vector<128x128xbf16>, vector<1x128xf32> -> vector<1x128xf32>
    %152 = arith.addf %141, %151 : vector<1x128xf32>
    %153 = vector.extract_strided_slice %108 {offsets = [4, 0], sizes = [1, 128], strides = [1, 1]} : vector<8x128xi32> to vector<1x128xi32>
    %154 = vector.shape_cast %153 : vector<1x128xi32> to vector<1x128x1xi32>
    %155 = vector.broadcast %154 : vector<1x128x1xi32> to vector<1x128x128xi32>
    %156 = vector.broadcast %3 : vector<1x1x128xi32> to vector<1x128x128xi32>
    %157 = arith.cmpi eq, %155, %156 : vector<1x128x128xi32>
    %158 = arith.extui %157 : vector<1x128x128xi1> to vector<1x128x128xi32>
    %159 = arith.sitofp %158 : vector<1x128x128xi32> to vector<1x128x128xf32>
    %160 = arith.truncf %159 : vector<1x128x128xf32> to vector<1x128x128xbf16>
    %161 = vector.shape_cast %160 : vector<1x128x128xbf16> to vector<128x128xbf16>
    %cst_26 = arith.constant dense<0.000000e+00> : vector<1x128xf32>
    %162 = tpu.matmul %4, %161, %cst_26 {dimension_numbers = #tpu.dot_dimension_numbers<[1], [0], [0], [1], [0, 0, 1, 1], [], []>} : vector<1x128xbf16>, vector<128x128xbf16>, vector<1x128xf32> -> vector<1x128xf32>
    %163 = arith.addf %152, %162 : vector<1x128xf32>
    %164 = vector.extract_strided_slice %108 {offsets = [5, 0], sizes = [1, 128], strides = [1, 1]} : vector<8x128xi32> to vector<1x128xi32>
    %165 = vector.shape_cast %164 : vector<1x128xi32> to vector<1x128x1xi32>
    %166 = vector.broadcast %165 : vector<1x128x1xi32> to vector<1x128x128xi32>
    %167 = vector.broadcast %3 : vector<1x1x128xi32> to vector<1x128x128xi32>
    %168 = arith.cmpi eq, %166, %167 : vector<1x128x128xi32>
    %169 = arith.extui %168 : vector<1x128x128xi1> to vector<1x128x128xi32>
    %170 = arith.sitofp %169 : vector<1x128x128xi32> to vector<1x128x128xf32>
    %171 = arith.truncf %170 : vector<1x128x128xf32> to vector<1x128x128xbf16>
    %172 = vector.shape_cast %171 : vector<1x128x128xbf16> to vector<128x128xbf16>
    %cst_27 = arith.constant dense<0.000000e+00> : vector<1x128xf32>
    %173 = tpu.matmul %4, %172, %cst_27 {dimension_numbers = #tpu.dot_dimension_numbers<[1], [0], [0], [1], [0, 0, 1, 1], [], []>} : vector<1x128xbf16>, vector<128x128xbf16>, vector<1x128xf32> -> vector<1x128xf32>
    %174 = arith.addf %163, %173 : vector<1x128xf32>
    %175 = vector.extract_strided_slice %108 {offsets = [6, 0], sizes = [1, 128], strides = [1, 1]} : vector<8x128xi32> to vector<1x128xi32>
    %176 = vector.shape_cast %175 : vector<1x128xi32> to vector<1x128x1xi32>
    %177 = vector.broadcast %176 : vector<1x128x1xi32> to vector<1x128x128xi32>
    %178 = vector.broadcast %3 : vector<1x1x128xi32> to vector<1x128x128xi32>
    %179 = arith.cmpi eq, %177, %178 : vector<1x128x128xi32>
    %180 = arith.extui %179 : vector<1x128x128xi1> to vector<1x128x128xi32>
    %181 = arith.sitofp %180 : vector<1x128x128xi32> to vector<1x128x128xf32>
    %182 = arith.truncf %181 : vector<1x128x128xf32> to vector<1x128x128xbf16>
    %183 = vector.shape_cast %182 : vector<1x128x128xbf16> to vector<128x128xbf16>
    %cst_28 = arith.constant dense<0.000000e+00> : vector<1x128xf32>
    %184 = tpu.matmul %4, %183, %cst_28 {dimension_numbers = #tpu.dot_dimension_numbers<[1], [0], [0], [1], [0, 0, 1, 1], [], []>} : vector<1x128xbf16>, vector<128x128xbf16>, vector<1x128xf32> -> vector<1x128xf32>
    %185 = arith.addf %174, %184 : vector<1x128xf32>
    %186 = vector.extract_strided_slice %108 {offsets = [7, 0], sizes = [1, 128], strides = [1, 1]} : vector<8x128xi32> to vector<1x128xi32>
    %187 = vector.shape_cast %186 : vector<1x128xi32> to vector<1x128x1xi32>
    %188 = vector.broadcast %187 : vector<1x128x1xi32> to vector<1x128x128xi32>
    %189 = vector.broadcast %3 : vector<1x1x128xi32> to vector<1x128x128xi32>
    %190 = arith.cmpi eq, %188, %189 : vector<1x128x128xi32>
    %191 = arith.extui %190 : vector<1x128x128xi1> to vector<1x128x128xi32>
    %192 = arith.sitofp %191 : vector<1x128x128xi32> to vector<1x128x128xf32>
    %193 = arith.truncf %192 : vector<1x128x128xf32> to vector<1x128x128xbf16>
    %194 = vector.shape_cast %193 : vector<1x128x128xbf16> to vector<128x128xbf16>
    %cst_29 = arith.constant dense<0.000000e+00> : vector<1x128xf32>
    %195 = tpu.matmul %4, %194, %cst_29 {dimension_numbers = #tpu.dot_dimension_numbers<[1], [0], [0], [1], [0, 0, 1, 1], [], []>} : vector<1x128xbf16>, vector<128x128xbf16>, vector<1x128xf32> -> vector<1x128xf32>
    %196 = arith.addf %185, %195 : vector<1x128xf32>
    %c1_i32 = arith.constant 1 : i32
    %c0_30 = arith.constant 0 : index
    %c0_31 = arith.constant 0 : index
    %c0_32 = arith.constant 0 : index
    %c0_33 = arith.constant 0 : index
    %197 = vector.load %arg4[%c0_30, %c0_31, %c0_32, %c0_33] : memref<1x1x1x128xi32, #tpu.memory_space<vmem>>, vector<1x1x1x128xi32>
    %198 = vector.shape_cast %197 : vector<1x1x1x128xi32> to vector<1x128xi32>
    %199 = arith.fptosi %196 : vector<1x128xf32> to vector<1x128xi32>
    %200 = arith.addi %198, %199 : vector<1x128xi32>
    %c0_34 = arith.constant 0 : index
    %c0_35 = arith.constant 0 : index
    %c0_36 = arith.constant 0 : index
    %c0_37 = arith.constant 0 : index
    %201 = vector.load %arg4[%c0_34, %c0_35, %c0_36, %c0_37] : memref<1x1x1x128xi32, #tpu.memory_space<vmem>>, vector<1x1x1x128xi32>
    %202 = vector.shape_cast %201 : vector<1x1x1x128xi32> to vector<1x128xi32>
    %203 = vector.shape_cast %200 : vector<1x128xi32> to vector<1x1x1x128xi32>
    tpu.vector_store %arg4[%c0_34, %c0_35, %c0_36, %c0_37], %203 {strides = array<i32>} : memref<1x1x1x128xi32, #tpu.memory_space<vmem>>, vector<1x1x1x128xi32>,
    return
  }
  func.func @transform_0(%arg0: i32, %arg1: i32, %arg2: i32) -> (i32, i32, i32, i32) {
    %c1_i32 = arith.constant 1 : i32
    %0 = arith.muli %arg0, %c1_i32 : i32
    %1 = arith.addi %0, %arg2 : i32
    %c0_i32 = arith.constant 0 : i32
    %c0_i32_0 = arith.constant 0 : i32
    %c0_i32_1 = arith.constant 0 : i32
    return %arg1, %c0_i32, %1, %c0_i32_0 : i32, i32, i32, i32
  }
  func.func @transform_1(%arg0: i32, %arg1: i32, %arg2: i32) -> (i32, i32, i32, i32) {
    %c0_i32 = arith.constant 0 : i32
    %c0_i32_0 = arith.constant 0 : i32
    %c0_i32_1 = arith.constant 0 : i32
    return %arg0, %arg1, %c0_i32, %c0_i32_0 : i32, i32, i32, i32
  }
}

</mosaic_0001>

<llo_original>
// kernel: tpu_custom_call.1
$region0: #{tpu_custom_call.1}
  #allocation0 [shape = 'u32[]', space=smem, size = 0x4, offset = 0x4, fixed_abs, tag = 'smem constant byte address 0x4 - core index']
  #allocation1 [shape = 'u32[144,128]{1,0:T(1,128)}', space=vmem, size = 0x12000, scoped, tag = 'internal scratch']
  %s0 = inlined_call_operand.hbm [shape: f32[2,3,8,128], index: 0, kind: input, shape index: {}]
  %s1 = inlined_call_operand.hbm [shape: s32[1,2,1,128], index: 1, kind: output, shape index: {}]
  %s2 = sld [smem:[#allocation0]]
  $region45: #{tpu_custom_call.1} parent=0
    _
  %s4 = ssub.s32 1, %s2
  %s5 = scalar_select 0, %s4, %s2
  $region1: #{tpu_custom_call.1} parent=0
    #allocation2 [shape = 'u8[24576]{0}', space=vmem, size = 0x6000, scoped, tag = 'input window, operand 0']
    #allocation3 [shape = 's32[2]{0}', space=sflag, size = 0x8, scoped, tag = 'scoped memory for tpu_custom_call.1']
    #allocation4 [shape = 's32[2]{0}', space=sflag, size = 0x8, scoped, tag = 'scoped memory for tpu_custom_call.1']
    #allocation5 [shape = 'u8[1024]{0}', space=vmem, size = 0x400, scoped, tag = 'output window, operand 0']
    %6 = vsyncpa [#allocation3], 0
    %s7 = scalar_lea.sflag [#allocation3], 1
    %8 = vsyncpa %s7, 0
    %9 = vsyncpa [#allocation4], 0
    %s10 = scalar_lea.sflag [#allocation4], 1
    %11 = vsyncpa %s10, 0
    loop: start=0, step=1, limit=4
    $region2: #{tpu_custom_call.1} parent=1 // loop_pre_header
      _
    $region3: #{tpu_custom_call.1} parent=1 // loop_header
      %s13 = sphi 0, %s17
      %p14 = scmp.ge.s32.totalorder %s13, 4
      %s20 = sphi 0, %s39
      %s21 = sphi 0, %s35
      %s22 = sphi 0, %s31
      %s23 = sphi 0, %s20
      %s24 = sphi 0, %s21
      %s25 = sphi 0, %s22
      %s26 = sphi 0, %s23
      %s27 = sphi 0, %s24
      %s28 = sphi 0, %s25
      %s46 = sphi 0, %s48
      %s49 = sphi 0, %s46
      %s50 = sphi 0, %s49
      %s66 = sphi 0, %s50
      %s74 = sphi 0, %s76
      %s77 = sphi 0, %s74
      %s78 = sphi 0, %s77
      %s94 = sphi 0, %s78
    $region4: #{tpu_custom_call.1} parent=1 // loop_header_branch
      %16 = sbr.rel (%p14) target = $region8
    $region5: #{tpu_custom_call.1} parent=1 // loop_body
      %s18 = ssub.s32 %s13, 1
      %s19 = ssub.s32 %s13, 2
      %s29 = sadd.s32 1, %s22
      %p30 = scmp.ge.s32.totalorder %s29, 1
      %s31 = scalar_select %p30, 0, %s29
      %s32 = sadd.s32 1, %s21
      %s33 = scalar_select %p30, %s32, %s21
      %p34 = scmp.ge.s32.totalorder %s33, 2
      %s35 = scalar_select %p34, 0, %s33
      %s36 = sadd.s32 1, %s20
      %s37 = scalar_select %p34, %s36, %s20
      %p38 = scmp.ge.s32.totalorder %s37, 1
      %s39 = scalar_select %p38, 0, %s37
      %s40 = sadd.s32 %s20, %s22
      %s41 = sadd.s32 %s39, %s31
      %s42 = ssub.s32 %s21, %s35
      %s43 = ssub.s32 %s40, %s41
      %s44 = sor.u32 %s42, %s43
      %p45 = scmp.eq.s32.totalorder %s44, 0
      %s47 = sadd.s32 %s46, 1
      %s48 = scalar_select %p45, %s46, %s47
      %p51 = pneg %p45
      %p52 = scmp.eq.s32.totalorder %s13, 1
      %p53 = por %p51, %p52
      %p54 = scmp.ne.s32.totalorder %s46, %s49
      %p55 = scmp.eq.s32.totalorder %s13, 0
      %p56 = por %p54, %p55
      %p57 = scmp.ne.s32.totalorder %s46, %s49
      %p58 = scmp.eq.s32.totalorder %s18, 1
      %p59 = por %p57, %p58
      %p60 = scmp.ne.s32.totalorder %s49, %s50
      %p61 = scmp.eq.s32.totalorder %s18, 0
      %p62 = por %p60, %p61
      %p63 = scmp.ne.s32.totalorder %s49, %s50
      %p64 = scmp.eq.s32.totalorder %s19, 1
      %p65 = por %p63, %p64
      %p67 = scmp.ne.s32.totalorder %s50, %s66
      %p68 = scmp.eq.s32.totalorder %s19, 0
      %p69 = por %p67, %p68
      %s70 = ssub.s32 %s20, %s39
      %s71 = ssub.s32 %s21, %s35
      %s72 = sor.u32 %s70, %s71
      %p73 = scmp.eq.s32.totalorder %s72, 0
      %s75 = sadd.s32 %s74, 1
      %s76 = scalar_select %p73, %s74, %s75
      %p79 = pneg %p73
      %p80 = scmp.eq.s32.totalorder %s13, 1
      %p81 = por %p79, %p80
      %p82 = scmp.ne.s32.totalorder %s74, %s77
      %p83 = scmp.eq.s32.totalorder %s13, 0
      %p84 = por %p82, %p83
      %p85 = scmp.ne.s32.totalorder %s74, %s77
      %p86 = scmp.eq.s32.totalorder %s18, 1
      %p87 = por %p85, %p86
      %p88 = scmp.ne.s32.totalorder %s77, %s78
      %p89 = scmp.eq.s32.totalorder %s18, 0
      %p90 = por %p88, %p89
      %p91 = scmp.ne.s32.totalorder %s77, %s78
      %p92 = scmp.eq.s32.totalorder %s19, 1
      %p93 = por %p91, %p92
      %p95 = scmp.ne.s32.totalorder %s78, %s94
      %p96 = scmp.eq.s32.totalorder %s19, 0
      %p97 = por %p95, %p96
      %p98 = scmp.le.s32.totalorder 1, %s13
      %p99 = scmp.lt.s32.totalorder %s13, 3
      %p100 = pnand %p98, %p99
      %p101 = pneg %p100
      // Predicated region
      $region9: #{tpu_custom_call.1} parent=5 // pred_check
        _
      $region10: #{tpu_custom_call.1} parent=5 // pred_check_branch
        %103 = sbr.rel (%p100) target = $region12
      $region11: #{tpu_custom_call.1} parent=5 // pred_region
        %s104 = ssub.s32 %s13, 1
      $region12: #{tpu_custom_call.1} parent=5 // pred_fallthru
        _
      %p105 = scmp.lt.s32.totalorder %s13, 2
      // Predicated region
      $region13: #{tpu_custom_call.1} parent=5 // pred_check
        %p106 = pneg %p105
      $region14: #{tpu_custom_call.1} parent=5 // pred_check_branch
        %108 = sbr.rel (%p106) target = $region16
      $region15: #{tpu_custom_call.1} parent=5 // pred_region
        // Predicated region
        $region17: #{tpu_custom_call.1} parent=15 // pred_check
          %p109 = pneg %p56
        $region18: #{tpu_custom_call.1} parent=15 // pred_check_branch
          %111 = sbr.rel (%p109) target = $region20
        $region19: #{tpu_custom_call.1} parent=15 // pred_region
          %s112 = sand.u32 %s46, 1
          %s113 = scalar_lea.sflag [#allocation3], %s112
          %s114 = sand.u32 %s46, 1
          %s115 = smul.addr %s114, 24
          %s116 = scalar_lea.vmem [#allocation2], %s115
          %s117 = sadd.s32 %s20, %s22
          %s119 = ssub.s32 384, 384
          %120 = vsyncadd %s113, %s119
          %s121 = smul.addr %s21, 3
          %s122 = sadd.s32 %s117, %s121
          %s123 = smul.addr %s122, 128
          %s124 = scalar_lea.hbm %s0, %s123
          %s125 = sshll.u32 %s116, 4
          %s126 = int_to_ptr.vmem [resolvable:$true] %s125
          %131 = dma.hbm_to_vmem [thread:$0]  %s124, 384, %s126, %s113, 128, 128, 8
        $region20: #{tpu_custom_call.1} parent=15 // pred_fallthru
          _
      $region16: #{tpu_custom_call.1} parent=5 // pred_fallthru
        _
      %p132 = scmp.le.s32.totalorder 1, %s13
      %p133 = scmp.lt.s32.totalorder %s13, 3
      %p134 = pnand %p132, %p133
      %p135 = pneg %p134
      // Predicated region
      $region21: #{tpu_custom_call.1} parent=5 // pred_check
        _
      $region22: #{tpu_custom_call.1} parent=5 // pred_check_branch
        %137 = sbr.rel (%p134) target = $region24
      $region23: #{tpu_custom_call.1} parent=5 // pred_region
        %s138 = ssub.s32 %s13, 1
        %s139 = sand.u32 %s49, 1
        %s140 = scalar_lea.sflag [#allocation3], %s139
        %s141 = sand.u32 %s49, 1
        %s142 = smul.addr %s141, 24
        %s143 = scalar_lea.vmem [#allocation2], %s142
        // Predicated region
        $region25: #{tpu_custom_call.1} parent=23 // pred_check
          %p144 = pneg %p62
        $region26: #{tpu_custom_call.1} parent=23 // pred_check_branch
          %146 = sbr.rel (%p144) target = $region28
        $region27: #{tpu_custom_call.1} parent=23 // pred_region
          %147 = dma.done %s140, 384
        $region28: #{tpu_custom_call.1} parent=23 // pred_fallthru
          _
        %s148 = sand.u32 %s49, 1
        %s149 = scalar_lea.sflag [#allocation3], %s148
        %s150 = sand.u32 %s49, 1
        %s151 = smul.addr %s150, 24
        %s152 = scalar_lea.vmem [#allocation2], %s151
        %p153 = pneg %p62
        %p154 = pneg %p59
        %p155 = pneg %p90
        %p156 = pneg %p87
        %s157 = sand.u32 %s77, 1
        %s158 = scalar_lea.sflag [#allocation4], %s157
        %s159 = sand.u32 %s77, 1
        %s160 = scalar_lea.vmem [#allocation5], %s159
        %s161 = sadd.s32 %s23, %s25
        %p164 = scmp.eq.s32.totalorder %s25, 0
        // Predicated region
        $region29: #{tpu_custom_call.1} parent=23 // pred_check
          %p165 = pneg %p164
        $region30: #{tpu_custom_call.1} parent=23 // pred_check_branch
          %167 = sbr.rel (%p165) target = $region32
        $region31: #{tpu_custom_call.1} parent=23 // pred_region
          %168 = vst [vmem:[%s160] sm:$0x1] 0
        $region32: #{tpu_custom_call.1} parent=23 // pred_fallthru
          _
        %v169 = vlaneseq
        %v170 = vand.u32 %v169, 127
        %v171 = vld [vmem:[%s143] sm:$0xff]
        %v172 = vld [vmem:[%s143 + $0x8] sm:$0xff]
        %v173 = vld [vmem:[%s143 + $0x10] sm:$0xff]
        %v174 = vmul.f32 %v171, %v171
        %v175 = vmul.f32 %v172, %v172
        %v176 = vadd.f32 %v174, %v175
        %v177 = vmul.f32 %v173, %v173
        %v178 = vadd.f32 %v176, %v177
        %v179 = vrsqrt.pop %v178
        %v180 = vmul.f32 %v178, %v179
        %vm181 = vcmp.eq.f32.partialorder %v178, inf
        %v182 = vsel %vm181, %v178, %v180
        %vm183 = vcmp.eq.f32.partialorder %v178, 0.0
        %v184 = vand.u32 %v178, 2147483648
        %v185 = vsel %vm183, %v184, %v182
        %v186 = vrsqrt.pop %v176
        %v187 = vmul.f32 %v176, %v186
        %vm188 = vcmp.eq.f32.partialorder %v176, inf
        %v189 = vsel %vm188, %v176, %v187
        %vm190 = vcmp.eq.f32.partialorder %v176, 0.0
        %v191 = vand.u32 %v176, 2147483648
        %v192 = vsel %vm190, %v191, %v189
        %vm193 = vcmp.ge.f32.partialorder %v185, 0.33333334
        %v194 = vsel %vm193, 1, 0
        %vm195 = vcmp.ge.f32.partialorder %v185, 0.6666667
        %v196 = vsel %vm195, 1, 0
        %v197 = vadd.s32 %v194, %v196
        %vm198 = vcmp.ge.f32.partialorder %v185, 1.0
        %v199 = vsel %vm198, 1, 0
        %v200 = vadd.s32 %v197, %v199
        %v201 = vmul.f32 %v185, 6.123234e-17
        %vm202 = vcmp.le.f32.partialorder %v173, %v201
        %v203 = vsel %vm202, 1, 0
        %v204 = vmul.f32 %v185, -1.0
        %vm205 = vcmp.le.f32.partialorder %v173, %v204
        %v206 = vsel %vm205, 1, 0
        %v207 = vadd.s32 %v203, %v206
        %vm208 = vcmp.lt.f32.partialorder %v172, 0.0
        %v209 = vmul.f32 %v192, 0.70710677
        %vm210 = vcmp.le.f32.partialorder %v171, %v209
        %vm211 = vmor %vm208, %vm210
        %v212 = vsel %vm211, 1, 0
        %v213 = vmul.f32 %v192, 6.123234e-17
        %vm214 = vcmp.le.f32.partialorder %v171, %v213
        %vm215 = vmor %vm208, %vm214
        %v216 = vsel %vm215, 1, 0
        %v217 = vadd.s32 %v212, %v216
        %v218 = vmul.f32 %v192, -0.70710677
        %vm219 = vcmp.le.f32.partialorder %v171, %v218
        %vm220 = vmor %vm208, %vm219
        %v221 = vsel %vm220, 1, 0
        %v222 = vadd.s32 %v217, %v221
        %v223 = vmul.f32 %v192, -1.0
        %vm224 = vcmp.le.f32.partialorder %v171, %v223
        %vm225 = vmor %vm208, %vm224
        %v226 = vsel %vm225, 1, 0
        %v227 = vadd.s32 %v222, %v226
        %vm228 = vcmp.ge.f32.partialorder %v171, %v218
        %vm229 = vmand %vm208, %vm228
        %v230 = vsel %vm229, 1, 0
        %v231 = vadd.s32 %v227, %v230
        %v232 = vmul.f32 %v192, -1.8369701e-16
        %vm233 = vcmp.ge.f32.partialorder %v171, %v232
        %vm234 = vmand %vm208, %vm233
        %v235 = vsel %vm234, 1, 0
        %v236 = vadd.s32 %v231, %v235
        %vm237 = vcmp.ge.f32.partialorder %v171, %v209
        %vm238 = vmand %vm208, %vm237
        %v239 = vsel %vm238, 1, 0
        %v240 = vadd.s32 %v236, %v239
        %vm241 = vcmp.lt.s32.totalorder %v200, 3
        %vm242 = vcmp.lt.s32.totalorder %v207, 2
        %vm243 = vmand %vm241, %vm242
        %v244 = vmul.u32 %v200, 16
        %v245 = vmul.u32 %v240, 2
        %v246 = vadd.s32 %v244, %v245
        %v247 = vadd.s32 %v246, %v207
        %v248 = vsel %vm243, %v247, 4294967295
        %v249 = vlaneseq
        %v250 = vshrl.u32 %v249, 7
        %v251 = vsub.s32 0, %v250
        %v252 = vrot.slane %v248, %v251
        %254 = vbcast.lane.b32.xlu0 %v252, 256
        %v255 = vpop.permute.xlu0 %254
        %s257 = sor.u32 256, 8
        %258 = vbcast.lane.b32.xlu0 %v252, %s257
        %v259 = vpop.permute.xlu0 %258
        %s261 = sor.u32 256, 16
        %262 = vbcast.lane.b32.xlu0 %v252, %s261
        %v263 = vpop.permute.xlu0 %262
        %s265 = sor.u32 256, 24
        %266 = vbcast.lane.b32.xlu0 %v252, %s265
        %v267 = vpop.permute.xlu0 %266
        %s269 = sor.u32 256, 32
        %270 = vbcast.lane.b32.xlu0 %v252, %s269
        %v271 = vpop.permute.xlu0 %270
        %s273 = sor.u32 256, 40
        %274 = vbcast.lane.b32.xlu0 %v252, %s273
        %v275 = vpop.permute.xlu0 %274
        %s277 = sor.u32 256, 48
        %278 = vbcast.lane.b32.xlu0 %v252, %s277
        %v279 = vpop.permute.xlu0 %278
        %s281 = sor.u32 256, 56
        %282 = vbcast.lane.b32.xlu0 %v252, %s281
        %v283 = vpop.permute.xlu0 %282
        %s285 = sor.u32 256, 64
        %286 = vbcast.lane.b32.xlu0 %v252, %s285
        %v287 = vpop.permute.xlu0 %286
        %s289 = sor.u32 256, 72
        %290 = vbcast.lane.b32.xlu0 %v252, %s289
        %v291 = vpop.permute.xlu0 %290
        %s293 = sor.u32 256, 80
        %294 = vbcast.lane.b32.xlu0 %v252, %s293
        %v295 = vpop.permute.xlu0 %294
        %s297 = sor.u32 256, 88
        %298 = vbcast.lane.b32.xlu0 %v252, %s297
        %v299 = vpop.permute.xlu0 %298
        %s301 = sor.u32 256, 96
        %302 = vbcast.lane.b32.xlu0 %v252, %s301
        %v303 = vpop.permute.xlu0 %302
        %s305 = sor.u32 256, 104
        %306 = vbcast.lane.b32.xlu0 %v252, %s305
        %v307 = vpop.permute.xlu0 %306
        %s309 = sor.u32 256, 112
        %310 = vbcast.lane.b32.xlu0 %v252, %s309
        %v311 = vpop.permute.xlu0 %310
        %s313 = sor.u32 256, 120
        %314 = vbcast.lane.b32.xlu0 %v252, %s313
        %v315 = vpop.permute.xlu0 %314
        %vm316 = vcmp.eq.s32.totalorder %v255, %v170
        %vm317 = vcmp.eq.s32.totalorder %v259, %v170
        %vm318 = vcmp.eq.s32.totalorder %v263, %v170
        %vm319 = vcmp.eq.s32.totalorder %v267, %v170
        %vm320 = vcmp.eq.s32.totalorder %v271, %v170
        %vm321 = vcmp.eq.s32.totalorder %v275, %v170
        %vm322 = vcmp.eq.s32.totalorder %v279, %v170
        %vm323 = vcmp.eq.s32.totalorder %v283, %v170
        %vm324 = vcmp.eq.s32.totalorder %v287, %v170
        %vm325 = vcmp.eq.s32.totalorder %v291, %v170
        %vm326 = vcmp.eq.s32.totalorder %v295, %v170
        %vm327 = vcmp.eq.s32.totalorder %v299, %v170
        %vm328 = vcmp.eq.s32.totalorder %v303, %v170
        %vm329 = vcmp.eq.s32.totalorder %v307, %v170
        %vm330 = vcmp.eq.s32.totalorder %v311, %v170
        %vm331 = vcmp.eq.s32.totalorder %v315, %v170
        %v332 = vsel %vm316, 1, 0
        %v333 = vsel %vm317, 1, 0
        %v334 = vsel %vm318, 1, 0
        %v335 = vsel %vm319, 1, 0
        %v336 = vsel %vm320, 1, 0
        %v337 = vsel %vm321, 1, 0
        %v338 = vsel %vm322, 1, 0
        %v339 = vsel %vm323, 1, 0
        %v340 = vsel %vm324, 1, 0
        %v341 = vsel %vm325, 1, 0
        %v342 = vsel %vm326, 1, 0
        %v343 = vsel %vm327, 1, 0
        %v344 = vsel %vm328, 1, 0
        %v345 = vsel %vm329, 1, 0
        %v346 = vsel %vm330, 1, 0
        %v347 = vsel %vm331, 1, 0
        %v348 = vcvt.s32.f32 %v332
        %v349 = vcvt.s32.f32 %v333
        %v350 = vcvt.s32.f32 %v334
        %v351 = vcvt.s32.f32 %v335
        %v352 = vcvt.s32.f32 %v336
        %v353 = vcvt.s32.f32 %v337
        %v354 = vcvt.s32.f32 %v338
        %v355 = vcvt.s32.f32 %v339
        %v356 = vcvt.s32.f32 %v340
        %v357 = vcvt.s32.f32 %v341
        %v358 = vcvt.s32.f32 %v342
        %v359 = vcvt.s32.f32 %v343
        %v360 = vcvt.s32.f32 %v344
        %v361 = vcvt.s32.f32 %v345
        %v362 = vcvt.s32.f32 %v346
        %v363 = vcvt.s32.f32 %v347
        %v364 = vpack.c.bf16 %v349, %v348
        %v365 = vpack.c.bf16 %v351, %v350
        %v366 = vpack.c.bf16 %v353, %v352
        %v367 = vpack.c.bf16 %v355, %v354
        %v368 = vpack.c.bf16 %v357, %v356
        %v369 = vpack.c.bf16 %v359, %v358
        %v370 = vpack.c.bf16 %v361, %v360
        %v371 = vpack.c.bf16 %v363, %v362
        %v372 = vlaneseq
        %v373 = vshrl.u32 %v372, 7
        %v374 = vsub.s32 1, %v373
        %v375 = vrot.slane %v248, %v374
        %377 = vbcast.lane.b32.xlu0 %v375, 256
        %v378 = vpop.permute.xlu0 %377
        %s380 = sor.u32 256, 8
        %381 = vbcast.lane.b32.xlu0 %v375, %s380
        %v382 = vpop.permute.xlu0 %381
        %s384 = sor.u32 256, 16
        %385 = vbcast.lane.b32.xlu0 %v375, %s384
        %v386 = vpop.permute.xlu0 %385
        %s388 = sor.u32 256, 24
        %389 = vbcast.lane.b32.xlu0 %v375, %s388
        %v390 = vpop.permute.xlu0 %389
        %s392 = sor.u32 256, 32
        %393 = vbcast.lane.b32.xlu0 %v375, %s392
        %v394 = vpop.permute.xlu0 %393
        %s396 = sor.u32 256, 40
        %397 = vbcast.lane.b32.xlu0 %v375, %s396
        %v398 = vpop.permute.xlu0 %397
        %s400 = sor.u32 256, 48
        %401 = vbcast.lane.b32.xlu0 %v375, %s400
        %v402 = vpop.permute.xlu0 %401
        %s404 = sor.u32 256, 56
        %405 = vbcast.lane.b32.xlu0 %v375, %s404
        %v406 = vpop.permute.xlu0 %405
        %s408 = sor.u32 256, 64
        %409 = vbcast.lane.b32.xlu0 %v375, %s408
        %v410 = vpop.permute.xlu0 %409
        %s412 = sor.u32 256, 72
        %413 = vbcast.lane.b32.xlu0 %v375, %s412
        %v414 = vpop.permute.xlu0 %413
        %s416 = sor.u32 256, 80
        %417 = vbcast.lane.b32.xlu0 %v375, %s416
        %v418 = vpop.permute.xlu0 %417
        %s420 = sor.u32 256, 88
        %421 = vbcast.lane.b32.xlu0 %v375, %s420
        %v422 = vpop.permute.xlu0 %421
        %s424 = sor.u32 256, 96
        %425 = vbcast.lane.b32.xlu0 %v375, %s424
        %v426 = vpop.permute.xlu0 %425
        %s428 = sor.u32 256, 104
        %429 = vbcast.lane.b32.xlu0 %v375, %s428
        %v430 = vpop.permute.xlu0 %429
        %s432 = sor.u32 256, 112
        %433 = vbcast.lane.b32.xlu0 %v375, %s432
        %v434 = vpop.permute.xlu0 %433
        %s436 = sor.u32 256, 120
        %437 = vbcast.lane.b32.xlu0 %v375, %s436
        %v438 = vpop.permute.xlu0 %437
        %vm439 = vcmp.eq.s32.totalorder %v378, %v170
        %vm440 = vcmp.eq.s32.totalorder %v382, %v170
        %vm441 = vcmp.eq.s32.totalorder %v386, %v170
        %vm442 = vcmp.eq.s32.totalorder %v390, %v170
        %vm443 = vcmp.eq.s32.totalorder %v394, %v170
        %vm444 = vcmp.eq.s32.totalorder %v398, %v170
        %vm445 = vcmp.eq.s32.totalorder %v402, %v170
        %vm446 = vcmp.eq.s32.totalorder %v406, %v170
        %vm447 = vcmp.eq.s32.totalorder %v410, %v170
        %vm448 = vcmp.eq.s32.totalorder %v414, %v170
        %vm449 = vcmp.eq.s32.totalorder %v418, %v170
        %vm450 = vcmp.eq.s32.totalorder %v422, %v170
        %vm451 = vcmp.eq.s32.totalorder %v426, %v170
        %vm452 = vcmp.eq.s32.totalorder %v430, %v170
        %vm453 = vcmp.eq.s32.totalorder %v434, %v170
        %vm454 = vcmp.eq.s32.totalorder %v438, %v170
        %v455 = vsel %vm439, 1, 0
        %v456 = vsel %vm440, 1, 0
        %v457 = vsel %vm441, 1, 0
        %v458 = vsel %vm442, 1, 0
        %v459 = vsel %vm443, 1, 0
        %v460 = vsel %vm444, 1, 0
        %v461 = vsel %vm445, 1, 0
        %v462 = vsel %vm446, 1, 0
        %v463 = vsel %vm447, 1, 0
        %v464 = vsel %vm448, 1, 0
        %v465 = vsel %vm449, 1, 0
        %v466 = vsel %vm450, 1, 0
        %v467 = vsel %vm451, 1, 0
        %v468 = vsel %vm452, 1, 0
        %v469 = vsel %vm453, 1, 0
        %v470 = vsel %vm454, 1, 0
        %v471 = vcvt.s32.f32 %v455
        %v472 = vcvt.s32.f32 %v456
        %v473 = vcvt.s32.f32 %v457
        %v474 = vcvt.s32.f32 %v458
        %v475 = vcvt.s32.f32 %v459
        %v476 = vcvt.s32.f32 %v460
        %v477 = vcvt.s32.f32 %v461
        %v478 = vcvt.s32.f32 %v462
        %v479 = vcvt.s32.f32 %v463
        %v480 = vcvt.s32.f32 %v464
        %v481 = vcvt.s32.f32 %v465
        %v482 = vcvt.s32.f32 %v466
        %v483 = vcvt.s32.f32 %v467
        %v484 = vcvt.s32.f32 %v468
        %v485 = vcvt.s32.f32 %v469
        %v486 = vcvt.s32.f32 %v470
        %v487 = vpack.c.bf16 %v472, %v471
        %v488 = vpack.c.bf16 %v474, %v473
        %v489 = vpack.c.bf16 %v476, %v475
        %v490 = vpack.c.bf16 %v478, %v477
        %v491 = vpack.c.bf16 %v480, %v479
        %v492 = vpack.c.bf16 %v482, %v481
        %v493 = vpack.c.bf16 %v484, %v483
        %v494 = vpack.c.bf16 %v486, %v485
        %495 = vmatprep.subr.bf16.mxu0 0
        %496 = vmatpush1.bf16.msra.mxu0 %v487
        %497 = vmatprep.subr.bf16.mxu0 0
        %498 = vmatpush1.bf16.msra.mxu0 %v488
        %499 = vmatprep.subr.bf16.mxu0 0
        %500 = vmatpush1.bf16.msra.mxu0 %v489
        %501 = vmatprep.subr.bf16.mxu0 0
        %502 = vmatpush1.bf16.msra.mxu0 %v490
        %503 = vmatprep.subr.bf16.mxu0 0
        %504 = vmatpush1.bf16.msra.mxu0 %v491
        %505 = vmatprep.subr.bf16.mxu0 0
        %506 = vmatpush1.bf16.msra.mxu0 %v492
        %507 = vmatprep.subr.bf16.mxu0 0
        %508 = vmatpush1.bf16.msra.mxu0 %v493
        %509 = vmatprep.subr.bf16.mxu0 0
        %510 = vmatpush1.bf16.msra.mxu0 %v494
        %511 = vmatprep.subr.bf16.mxu0 0
        %512 = vmatpush1.bf16.msra.mxu0 0
        %513 = vmatprep.subr.bf16.mxu0 0
        %514 = vmatpush1.bf16.msra.mxu0 0
        %515 = vmatprep.subr.bf16.mxu0 0
        %516 = vmatpush1.bf16.msra.mxu0 0
        %517 = vmatprep.subr.bf16.mxu0 0
        %518 = vmatpush1.bf16.msra.mxu0 0
        %519 = vmatprep.subr.bf16.mxu0 0
        %520 = vmatpush1.bf16.msra.mxu0 0
        %521 = vmatprep.subr.bf16.mxu0 0
        %522 = vmatpush1.bf16.msra.mxu0 0
        %523 = vmatprep.subr.bf16.mxu0 0
        %524 = vmatpush1.bf16.msra.mxu0 0
        %525 = vmatprep.subr.bf16.mxu0 0
        %526 = vmatpush1.bf16.msra.mxu0 0
        %527 = vmatprep.mubr.bf16.mxu0 0
        %528 = vmatmul.mubr.bf16.gmra.mrb[0].mxu0 1065369472
        %v529 = vpop.f32.mrb[0].mxu0
        %v530 = vadd.f32 0.0, %v529
        %v531 = vpop.f32.mrb[0].mxu0
        %v532 = vpop.f32.mrb[0].mxu0
        %v533 = vpop.f32.mrb[0].mxu0
        %534 = vdwg.mxu0
        %535 = vmatprep.subr.bf16.mxu0 0
        %536 = vmatpush1.bf16.msra.mxu0 %v364
        %537 = vmatprep.subr.bf16.mxu0 0
        %538 = vmatpush1.bf16.msra.mxu0 %v365
        %539 = vmatprep.subr.bf16.mxu0 0
        %540 = vmatpush1.bf16.msra.mxu0 %v366
        %541 = vmatprep.subr.bf16.mxu0 0
        %542 = vmatpush1.bf16.msra.mxu0 %v367
        %543 = vmatprep.subr.bf16.mxu0 0
        %544 = vmatpush1.bf16.msra.mxu0 %v368
        %545 = vmatprep.subr.bf16.mxu0 0
        %546 = vmatpush1.bf16.msra.mxu0 %v369
        %547 = vmatprep.subr.bf16.mxu0 0
        %548 = vmatpush1.bf16.msra.mxu0 %v370
        %549 = vmatprep.subr.bf16.mxu0 0
        %550 = vmatpush1.bf16.msra.mxu0 %v371
        %551 = vmatprep.subr.bf16.mxu0 0
        %552 = vmatpush1.bf16.msra.mxu0 0
        %553 = vmatprep.subr.bf16.mxu0 0
        %554 = vmatpush1.bf16.msra.mxu0 0
        %555 = vmatprep.subr.bf16.mxu0 0
        %556 = vmatpush1.bf16.msra.mxu0 0
        %557 = vmatprep.subr.bf16.mxu0 0
        %558 = vmatpush1.bf16.msra.mxu0 0
        %559 = vmatprep.subr.bf16.mxu0 0
        %560 = vmatpush1.bf16.msra.mxu0 0
        %561 = vmatprep.subr.bf16.mxu0 0
        %562 = vmatpush1.bf16.msra.mxu0 0
        %563 = vmatprep.subr.bf16.mxu0 0
        %564 = vmatpush1.bf16.msra.mxu0 0
        %565 = vmatprep.subr.bf16.mxu0 0
        %566 = vmatpush1.bf16.msra.mxu0 0
        %567 = vmatprep.mubr.bf16.mxu0 0
        %568 = vmatmul.mubr.bf16.gmra.mrb[0].mxu0 1065369472
        %v569 = vpop.f32.mrb[0].mxu0
        %v570 = vadd.f32 %v530, %v569
        %v571 = vpop.f32.mrb[0].mxu0
        %v572 = vpop.f32.mrb[0].mxu0
        %v573 = vpop.f32.mrb[0].mxu0
        %574 = vdwg.mxu0
        %v575 = vlaneseq
        %v576 = vshrl.u32 %v575, 7
        %v577 = vsub.s32 2, %v576
        %v578 = vrot.slane %v248, %v577
        %580 = vbcast.lane.b32.xlu0 %v578, 256
        %v581 = vpop.permute.xlu0 %580
        %s583 = sor.u32 256, 8
        %584 = vbcast.lane.b32.xlu0 %v578, %s583
        %v585 = vpop.permute.xlu0 %584
        %s587 = sor.u32 256, 16
        %588 = vbcast.lane.b32.xlu0 %v578, %s587
        %v589 = vpop.permute.xlu0 %588
        %s591 = sor.u32 256, 24
        %592 = vbcast.lane.b32.xlu0 %v578, %s591
        %v593 = vpop.permute.xlu0 %592
        %s595 = sor.u32 256, 32
        %596 = vbcast.lane.b32.xlu0 %v578, %s595
        %v597 = vpop.permute.xlu0 %596
        %s599 = sor.u32 256, 40
        %600 = vbcast.lane.b32.xlu0 %v578, %s599
        %v601 = vpop.permute.xlu0 %600
        %s603 = sor.u32 256, 48
        %604 = vbcast.lane.b32.xlu0 %v578, %s603
        %v605 = vpop.permute.xlu0 %604
        %s607 = sor.u32 256, 56
        %608 = vbcast.lane.b32.xlu0 %v578, %s607
        %v609 = vpop.permute.xlu0 %608
        %s611 = sor.u32 256, 64
        %612 = vbcast.lane.b32.xlu0 %v578, %s611
        %v613 = vpop.permute.xlu0 %612
        %s615 = sor.u32 256, 72
        %616 = vbcast.lane.b32.xlu0 %v578, %s615
        %v617 = vpop.permute.xlu0 %616
        %s619 = sor.u32 256, 80
        %620 = vbcast.lane.b32.xlu0 %v578, %s619
        %v621 = vpop.permute.xlu0 %620
        %s623 = sor.u32 256, 88
        %624 = vbcast.lane.b32.xlu0 %v578, %s623
        %v625 = vpop.permute.xlu0 %624
        %s627 = sor.u32 256, 96
        %628 = vbcast.lane.b32.xlu0 %v578, %s627
        %v629 = vpop.permute.xlu0 %628
        %s631 = sor.u32 256, 104
        %632 = vbcast.lane.b32.xlu0 %v578, %s631
        %v633 = vpop.permute.xlu0 %632
        %s635 = sor.u32 256, 112
        %636 = vbcast.lane.b32.xlu0 %v578, %s635
        %v637 = vpop.permute.xlu0 %636
        %s639 = sor.u32 256, 120
        %640 = vbcast.lane.b32.xlu0 %v578, %s639
        %v641 = vpop.permute.xlu0 %640
        %vm642 = vcmp.eq.s32.totalorder %v581, %v170
        %vm643 = vcmp.eq.s32.totalorder %v585, %v170
        %vm644 = vcmp.eq.s32.totalorder %v589, %v170
        %vm645 = vcmp.eq.s32.totalorder %v593, %v170
        %vm646 = vcmp.eq.s32.totalorder %v597, %v170
        %vm647 = vcmp.eq.s32.totalorder %v601, %v170
        %vm648 = vcmp.eq.s32.totalorder %v605, %v170
        %vm649 = vcmp.eq.s32.totalorder %v609, %v170
        %vm650 = vcmp.eq.s32.totalorder %v613, %v170
        %vm651 = vcmp.eq.s32.totalorder %v617, %v170
        %vm652 = vcmp.eq.s32.totalorder %v621, %v170
        %vm653 = vcmp.eq.s32.totalorder %v625, %v170
        %vm654 = vcmp.eq.s32.totalorder %v629, %v170
        %vm655 = vcmp.eq.s32.totalorder %v633, %v170
        %vm656 = vcmp.eq.s32.totalorder %v637, %v170
        %vm657 = vcmp.eq.s32.totalorder %v641, %v170
        %v658 = vsel %vm642, 1, 0
        %v659 = vsel %vm643, 1, 0
        %v660 = vsel %vm644, 1, 0
        %v661 = vsel %vm645, 1, 0
        %v662 = vsel %vm646, 1, 0
        %v663 = vsel %vm647, 1, 0
        %v664 = vsel %vm648, 1, 0
        %v665 = vsel %vm649, 1, 0
        %v666 = vsel %vm650, 1, 0
        %v667 = vsel %vm651, 1, 0
        %v668 = vsel %vm652, 1, 0
        %v669 = vsel %vm653, 1, 0
        %v670 = vsel %vm654, 1, 0
        %v671 = vsel %vm655, 1, 0
        %v672 = vsel %vm656, 1, 0
        %v673 = vsel %vm657, 1, 0
        %v674 = vcvt.s32.f32 %v658
        %v675 = vcvt.s32.f32 %v659
        %v676 = vcvt.s32.f32 %v660
        %v677 = vcvt.s32.f32 %v661
        %v678 = vcvt.s32.f32 %v662
        %v679 = vcvt.s32.f32 %v663
        %v680 = vcvt.s32.f32 %v664
        %v681 = vcvt.s32.f32 %v665
        %v682 = vcvt.s32.f32 %v666
        %v683 = vcvt.s32.f32 %v667
        %v684 = vcvt.s32.f32 %v668
        %v685 = vcvt.s32.f32 %v669
        %v686 = vcvt.s32.f32 %v670
        %v687 = vcvt.s32.f32 %v671
        %v688 = vcvt.s32.f32 %v672
        %v689 = vcvt.s32.f32 %v673
        %v690 = vpack.c.bf16 %v675, %v674
        %v691 = vpack.c.bf16 %v677, %v676
        %v692 = vpack.c.bf16 %v679, %v678
        %v693 = vpack.c.bf16 %v681, %v680
        %v694 = vpack.c.bf16 %v683, %v682
        %v695 = vpack.c.bf16 %v685, %v684
        %v696 = vpack.c.bf16 %v687, %v686
        %v697 = vpack.c.bf16 %v689, %v688
        %698 = vmatprep.subr.bf16.mxu0 0
        %699 = vmatpush1.bf16.msra.mxu0 %v690
        %700 = vmatprep.subr.bf16.mxu0 0
        %701 = vmatpush1.bf16.msra.mxu0 %v691
        %702 = vmatprep.subr.bf16.mxu0 0
        %703 = vmatpush1.bf16.msra.mxu0 %v692
        %704 = vmatprep.subr.bf16.mxu0 0
        %705 = vmatpush1.bf16.msra.mxu0 %v693
        %706 = vmatprep.subr.bf16.mxu0 0
        %707 = vmatpush1.bf16.msra.mxu0 %v694
        %708 = vmatprep.subr.bf16.mxu0 0
        %709 = vmatpush1.bf16.msra.mxu0 %v695
        %710 = vmatprep.subr.bf16.mxu0 0
        %711 = vmatpush1.bf16.msra.mxu0 %v696
        %712 = vmatprep.subr.bf16.mxu0 0
        %713 = vmatpush1.bf16.msra.mxu0 %v697
        %714 = vmatprep.subr.bf16.mxu0 0
        %715 = vmatpush1.bf16.msra.mxu0 0
        %716 = vmatprep.subr.bf16.mxu0 0
        %717 = vmatpush1.bf16.msra.mxu0 0
        %718 = vmatprep.subr.bf16.mxu0 0
        %719 = vmatpush1.bf16.msra.mxu0 0
        %720 = vmatprep.subr.bf16.mxu0 0
        %721 = vmatpush1.bf16.msra.mxu0 0
        %722 = vmatprep.subr.bf16.mxu0 0
        %723 = vmatpush1.bf16.msra.mxu0 0
        %724 = vmatprep.subr.bf16.mxu0 0
        %725 = vmatpush1.bf16.msra.mxu0 0
        %726 = vmatprep.subr.bf16.mxu0 0
        %727 = vmatpush1.bf16.msra.mxu0 0
        %728 = vmatprep.subr.bf16.mxu0 0
        %729 = vmatpush1.bf16.msra.mxu0 0
        %730 = vmatprep.mubr.bf16.mxu0 0
        %731 = vmatmul.mubr.bf16.gmra.mrb[0].mxu0 1065369472
        %v732 = vpop.f32.mrb[0].mxu0
        %v733 = vadd.f32 0.0, %v732
        %v734 = vpop.f32.mrb[0].mxu0
        %v735 = vpop.f32.mrb[0].mxu0
        %v736 = vpop.f32.mrb[0].mxu0
        %737 = vdwg.mxu0
        %v738 = vadd.f32 %v570, %v733
        %v739 = vlaneseq
        %v740 = vshrl.u32 %v739, 7
        %v741 = vsub.s32 3, %v740
        %v742 = vrot.slane %v248, %v741
        %744 = vbcast.lane.b32.xlu0 %v742, 256
        %v745 = vpop.permute.xlu0 %744
        %s747 = sor.u32 256, 8
        %748 = vbcast.lane.b32.xlu0 %v742, %s747
        %v749 = vpop.permute.xlu0 %748
        %s751 = sor.u32 256, 16
        %752 = vbcast.lane.b32.xlu0 %v742, %s751
        %v753 = vpop.permute.xlu0 %752
        %s755 = sor.u32 256, 24
        %756 = vbcast.lane.b32.xlu0 %v742, %s755
        %v757 = vpop.permute.xlu0 %756
        %s759 = sor.u32 256, 32
        %760 = vbcast.lane.b32.xlu0 %v742, %s759
        %v761 = vpop.permute.xlu0 %760
        %s763 = sor.u32 256, 40
        %764 = vbcast.lane.b32.xlu0 %v742, %s763
        %v765 = vpop.permute.xlu0 %764
        %s767 = sor.u32 256, 48
        %768 = vbcast.lane.b32.xlu0 %v742, %s767
        %v769 = vpop.permute.xlu0 %768
        %s771 = sor.u32 256, 56
        %772 = vbcast.lane.b32.xlu0 %v742, %s771
        %v773 = vpop.permute.xlu0 %772
        %s775 = sor.u32 256, 64
        %776 = vbcast.lane.b32.xlu0 %v742, %s775
        %v777 = vpop.permute.xlu0 %776
        %s779 = sor.u32 256, 72
        %780 = vbcast.lane.b32.xlu0 %v742, %s779
        %v781 = vpop.permute.xlu0 %780
        %s783 = sor.u32 256, 80
        %784 = vbcast.lane.b32.xlu0 %v742, %s783
        %v785 = vpop.permute.xlu0 %784
        %s787 = sor.u32 256, 88
        %788 = vbcast.lane.b32.xlu0 %v742, %s787
        %v789 = vpop.permute.xlu0 %788
        %s791 = sor.u32 256, 96
        %792 = vbcast.lane.b32.xlu0 %v742, %s791
        %v793 = vpop.permute.xlu0 %792
        %s795 = sor.u32 256, 104
        %796 = vbcast.lane.b32.xlu0 %v742, %s795
        %v797 = vpop.permute.xlu0 %796
        %s799 = sor.u32 256, 112
        %800 = vbcast.lane.b32.xlu0 %v742, %s799
        %v801 = vpop.permute.xlu0 %800
        %s803 = sor.u32 256, 120
        %804 = vbcast.lane.b32.xlu0 %v742, %s803
        %v805 = vpop.permute.xlu0 %804
        %vm806 = vcmp.eq.s32.totalorder %v745, %v170
        %vm807 = vcmp.eq.s32.totalorder %v749, %v170
        %vm808 = vcmp.eq.s32.totalorder %v753, %v170
        %vm809 = vcmp.eq.s32.totalorder %v757, %v170
        %vm810 = vcmp.eq.s32.totalorder %v761, %v170
        %vm811 = vcmp.eq.s32.totalorder %v765, %v170
        %vm812 = vcmp.eq.s32.totalorder %v769, %v170
        %vm813 = vcmp.eq.s32.totalorder %v773, %v170
        %vm814 = vcmp.eq.s32.totalorder %v777, %v170
        %vm815 = vcmp.eq.s32.totalorder %v781, %v170
        %vm816 = vcmp.eq.s32.totalorder %v785, %v170
        %vm817 = vcmp.eq.s32.totalorder %v789, %v170
        %vm818 = vcmp.eq.s32.totalorder %v793, %v170
        %vm819 = vcmp.eq.s32.totalorder %v797, %v170
        %vm820 = vcmp.eq.s32.totalorder %v801, %v170
        %vm821 = vcmp.eq.s32.totalorder %v805, %v170
        %v822 = vsel %vm806, 1, 0
        %v823 = vsel %vm807, 1, 0
        %v824 = vsel %vm808, 1, 0
        %v825 = vsel %vm809, 1, 0
        %v826 = vsel %vm810, 1, 0
        %v827 = vsel %vm811, 1, 0
        %v828 = vsel %vm812, 1, 0
        %v829 = vsel %vm813, 1, 0
        %v830 = vsel %vm814, 1, 0
        %v831 = vsel %vm815, 1, 0
        %v832 = vsel %vm816, 1, 0
        %v833 = vsel %vm817, 1, 0
        %v834 = vsel %vm818, 1, 0
        %v835 = vsel %vm819, 1, 0
        %v836 = vsel %vm820, 1, 0
        %v837 = vsel %vm821, 1, 0
        %v838 = vcvt.s32.f32 %v822
        %v839 = vcvt.s32.f32 %v823
        %v840 = vcvt.s32.f32 %v824
        %v841 = vcvt.s32.f32 %v825
        %v842 = vcvt.s32.f32 %v826
        %v843 = vcvt.s32.f32 %v827
        %v844 = vcvt.s32.f32 %v828
        %v845 = vcvt.s32.f32 %v829
        %v846 = vcvt.s32.f32 %v830
        %v847 = vcvt.s32.f32 %v831
        %v848 = vcvt.s32.f32 %v832
        %v849 = vcvt.s32.f32 %v833
        %v850 = vcvt.s32.f32 %v834
        %v851 = vcvt.s32.f32 %v835
        %v852 = vcvt.s32.f32 %v836
        %v853 = vcvt.s32.f32 %v837
        %v854 = vpack.c.bf16 %v839, %v838
        %v855 = vpack.c.bf16 %v841, %v840
        %v856 = vpack.c.bf16 %v843, %v842
        %v857 = vpack.c.bf16 %v845, %v844
        %v858 = vpack.c.bf16 %v847, %v846
        %v859 = vpack.c.bf16 %v849, %v848
        %v860 = vpack.c.bf16 %v851, %v850
        %v861 = vpack.c.bf16 %v853, %v852
        %862 = vmatprep.subr.bf16.mxu0 0
        %863 = vmatpush1.bf16.msra.mxu0 %v854
        %864 = vmatprep.subr.bf16.mxu0 0
        %865 = vmatpush1.bf16.msra.mxu0 %v855
        %866 = vmatprep.subr.bf16.mxu0 0
        %867 = vmatpush1.bf16.msra.mxu0 %v856
        %868 = vmatprep.subr.bf16.mxu0 0
        %869 = vmatpush1.bf16.msra.mxu0 %v857
        %870 = vmatprep.subr.bf16.mxu0 0
        %871 = vmatpush1.bf16.msra.mxu0 %v858
        %872 = vmatprep.subr.bf16.mxu0 0
        %873 = vmatpush1.bf16.msra.mxu0 %v859
        %874 = vmatprep.subr.bf16.mxu0 0
        %875 = vmatpush1.bf16.msra.mxu0 %v860
        %876 = vmatprep.subr.bf16.mxu0 0
        %877 = vmatpush1.bf16.msra.mxu0 %v861
        %878 = vmatprep.subr.bf16.mxu0 0
        %879 = vmatpush1.bf16.msra.mxu0 0
        %880 = vmatprep.subr.bf16.mxu0 0
        %881 = vmatpush1.bf16.msra.mxu0 0
        %882 = vmatprep.subr.bf16.mxu0 0
        %883 = vmatpush1.bf16.msra.mxu0 0
        %884 = vmatprep.subr.bf16.mxu0 0
        %885 = vmatpush1.bf16.msra.mxu0 0
        %886 = vmatprep.subr.bf16.mxu0 0
        %887 = vmatpush1.bf16.msra.mxu0 0
        %888 = vmatprep.subr.bf16.mxu0 0
        %889 = vmatpush1.bf16.msra.mxu0 0
        %890 = vmatprep.subr.bf16.mxu0 0
        %891 = vmatpush1.bf16.msra.mxu0 0
        %892 = vmatprep.subr.bf16.mxu0 0
        %893 = vmatpush1.bf16.msra.mxu0 0
        %894 = vmatprep.mubr.bf16.mxu0 0
        %895 = vmatmul.mubr.bf16.gmra.mrb[0].mxu0 1065369472
        %v896 = vpop.f32.mrb[0].mxu0
        %v897 = vadd.f32 0.0, %v896
        %v898 = vpop.f32.mrb[0].mxu0
        %v899 = vpop.f32.mrb[0].mxu0
        %v900 = vpop.f32.mrb[0].mxu0
        %901 = vdwg.mxu0
        %v902 = vadd.f32 %v738, %v897
        %v903 = vlaneseq
        %v904 = vshrl.u32 %v903, 7
        %v905 = vsub.s32 4, %v904
        %v906 = vrot.slane %v248, %v905
        %908 = vbcast.lane.b32.xlu0 %v906, 256
        %v909 = vpop.permute.xlu0 %908
        %s911 = sor.u32 256, 8
        %912 = vbcast.lane.b32.xlu0 %v906, %s911
        %v913 = vpop.permute.xlu0 %912
        %s915 = sor.u32 256, 16
        %916 = vbcast.lane.b32.xlu0 %v906, %s915
        %v917 = vpop.permute.xlu0 %916
        %s919 = sor.u32 256, 24
        %920 = vbcast.lane.b32.xlu0 %v906, %s919
        %v921 = vpop.permute.xlu0 %920
        %s923 = sor.u32 256, 32
        %924 = vbcast.lane.b32.xlu0 %v906, %s923
        %v925 = vpop.permute.xlu0 %924
        %s927 = sor.u32 256, 40
        %928 = vbcast.lane.b32.xlu0 %v906, %s927
        %v929 = vpop.permute.xlu0 %928
        %s931 = sor.u32 256, 48
        %932 = vbcast.lane.b32.xlu0 %v906, %s931
        %v933 = vpop.permute.xlu0 %932
        %s935 = sor.u32 256, 56
        %936 = vbcast.lane.b32.xlu0 %v906, %s935
        %v937 = vpop.permute.xlu0 %936
        %s939 = sor.u32 256, 64
        %940 = vbcast.lane.b32.xlu0 %v906, %s939
        %v941 = vpop.permute.xlu0 %940
        %s943 = sor.u32 256, 72
        %944 = vbcast.lane.b32.xlu0 %v906, %s943
        %v945 = vpop.permute.xlu0 %944
        %s947 = sor.u32 256, 80
        %948 = vbcast.lane.b32.xlu0 %v906, %s947
        %v949 = vpop.permute.xlu0 %948
        %s951 = sor.u32 256, 88
        %952 = vbcast.lane.b32.xlu0 %v906, %s951
        %v953 = vpop.permute.xlu0 %952
        %s955 = sor.u32 256, 96
        %956 = vbcast.lane.b32.xlu0 %v906, %s955
        %v957 = vpop.permute.xlu0 %956
        %s959 = sor.u32 256, 104
        %960 = vbcast.lane.b32.xlu0 %v906, %s959
        %v961 = vpop.permute.xlu0 %960
        %s963 = sor.u32 256, 112
        %964 = vbcast.lane.b32.xlu0 %v906, %s963
        %v965 = vpop.permute.xlu0 %964
        %s967 = sor.u32 256, 120
        %968 = vbcast.lane.b32.xlu0 %v906, %s967
        %v969 = vpop.permute.xlu0 %968
        %vm970 = vcmp.eq.s32.totalorder %v909, %v170
        %vm971 = vcmp.eq.s32.totalorder %v913, %v170
        %vm972 = vcmp.eq.s32.totalorder %v917, %v170
        %vm973 = vcmp.eq.s32.totalorder %v921, %v170
        %vm974 = vcmp.eq.s32.totalorder %v925, %v170
        %vm975 = vcmp.eq.s32.totalorder %v929, %v170
        %vm976 = vcmp.eq.s32.totalorder %v933, %v170
        %vm977 = vcmp.eq.s32.totalorder %v937, %v170
        %vm978 = vcmp.eq.s32.totalorder %v941, %v170
        %vm979 = vcmp.eq.s32.totalorder %v945, %v170
        %vm980 = vcmp.eq.s32.totalorder %v949, %v170
        %vm981 = vcmp.eq.s32.totalorder %v953, %v170
        %vm982 = vcmp.eq.s32.totalorder %v957, %v170
        %vm983 = vcmp.eq.s32.totalorder %v961, %v170
        %vm984 = vcmp.eq.s32.totalorder %v965, %v170
        %vm985 = vcmp.eq.s32.totalorder %v969, %v170
        %v986 = vsel %vm970, 1, 0
        %v987 = vsel %vm971, 1, 0
        %v988 = vsel %vm972, 1, 0
        %v989 = vsel %vm973, 1, 0
        %v990 = vsel %vm974, 1, 0
        %v991 = vsel %vm975, 1, 0
        %v992 = vsel %vm976, 1, 0
        %v993 = vsel %vm977, 1, 0
        %v994 = vsel %vm978, 1, 0
        %v995 = vsel %vm979, 1, 0
        %v996 = vsel %vm980, 1, 0
        %v997 = vsel %vm981, 1, 0
        %v998 = vsel %vm982, 1, 0
        %v999 = vsel %vm983, 1, 0
        %v1000 = vsel %vm984, 1, 0
        %v1001 = vsel %vm985, 1, 0
        %v1002 = vcvt.s32.f32 %v986
        %v1003 = vcvt.s32.f32 %v987
        %v1004 = vcvt.s32.f32 %v988
        %v1005 = vcvt.s32.f32 %v989
        %v1006 = vcvt.s32.f32 %v990
        %v1007 = vcvt.s32.f32 %v991
        %v1008 = vcvt.s32.f32 %v992
        %v1009 = vcvt.s32.f32 %v993
        %v1010 = vcvt.s32.f32 %v994
        %v1011 = vcvt.s32.f32 %v995
        %v1012 = vcvt.s32.f32 %v996
        %v1013 = vcvt.s32.f32 %v997
        %v1014 = vcvt.s32.f32 %v998
        %v1015 = vcvt.s32.f32 %v999
        %v1016 = vcvt.s32.f32 %v1000
        %v1017 = vcvt.s32.f32 %v1001
        %v1018 = vpack.c.bf16 %v1003, %v1002
        %v1019 = vpack.c.bf16 %v1005, %v1004
        %v1020 = vpack.c.bf16 %v1007, %v1006
        %v1021 = vpack.c.bf16 %v1009, %v1008
        %v1022 = vpack.c.bf16 %v1011, %v1010
        %v1023 = vpack.c.bf16 %v1013, %v1012
        %v1024 = vpack.c.bf16 %v1015, %v1014
        %v1025 = vpack.c.bf16 %v1017, %v1016
        %1026 = vmatprep.subr.bf16.mxu0 0
        %1027 = vmatpush1.bf16.msra.mxu0 %v1018
        %1028 = vmatprep.subr.bf16.mxu0 0
        %1029 = vmatpush1.bf16.msra.mxu0 %v1019
        %1030 = vmatprep.subr.bf16.mxu0 0
        %1031 = vmatpush1.bf16.msra.mxu0 %v1020
        %1032 = vmatprep.subr.bf16.mxu0 0
        %1033 = vmatpush1.bf16.msra.mxu0 %v1021
        %1034 = vmatprep.subr.bf16.mxu0 0
        %1035 = vmatpush1.bf16.msra.mxu0 %v1022
        %1036 = vmatprep.subr.bf16.mxu0 0
        %1037 = vmatpush1.bf16.msra.mxu0 %v1023
        %1038 = vmatprep.subr.bf16.mxu0 0
        %1039 = vmatpush1.bf16.msra.mxu0 %v1024
        %1040 = vmatprep.subr.bf16.mxu0 0
        %1041 = vmatpush1.bf16.msra.mxu0 %v1025
        %1042 = vmatprep.subr.bf16.mxu0 0
        %1043 = vmatpush1.bf16.msra.mxu0 0
        %1044 = vmatprep.subr.bf16.mxu0 0
        %1045 = vmatpush1.bf16.msra.mxu0 0
        %1046 = vmatprep.subr.bf16.mxu0 0
        %1047 = vmatpush1.bf16.msra.mxu0 0
        %1048 = vmatprep.subr.bf16.mxu0 0
        %1049 = vmatpush1.bf16.msra.mxu0 0
        %1050 = vmatprep.subr.bf16.mxu0 0
        %1051 = vmatpush1.bf16.msra.mxu0 0
        %1052 = vmatprep.subr.bf16.mxu0 0
        %1053 = vmatpush1.bf16.msra.mxu0 0
        %1054 = vmatprep.subr.bf16.mxu0 0
        %1055 = vmatpush1.bf16.msra.mxu0 0
        %1056 = vmatprep.subr.bf16.mxu0 0
        %1057 = vmatpush1.bf16.msra.mxu0 0
        %1058 = vmatprep.mubr.bf16.mxu0 0
        %1059 = vmatmul.mubr.bf16.gmra.mrb[0].mxu0 1065369472
        %v1060 = vpop.f32.mrb[0].mxu0
        %v1061 = vadd.f32 0.0, %v1060
        %v1062 = vpop.f32.mrb[0].mxu0
        %v1063 = vpop.f32.mrb[0].mxu0
        %v1064 = vpop.f32.mrb[0].mxu0
        %1065 = vdwg.mxu0
        %v1066 = vadd.f32 %v902, %v1061
        %v1067 = vlaneseq
        %v1068 = vshrl.u32 %v1067, 7
        %v1069 = vsub.s32 5, %v1068
        %v1070 = vrot.slane %v248, %v1069
        %1072 = vbcast.lane.b32.xlu0 %v1070, 256
        %v1073 = vpop.permute.xlu0 %1072
        %s1075 = sor.u32 256, 8
        %1076 = vbcast.lane.b32.xlu0 %v1070, %s1075
        %v1077 = vpop.permute.xlu0 %1076
        %s1079 = sor.u32 256, 16
        %1080 = vbcast.lane.b32.xlu0 %v1070, %s1079
        %v1081 = vpop.permute.xlu0 %1080
        %s1083 = sor.u32 256, 24
        %1084 = vbcast.lane.b32.xlu0 %v1070, %s1083
        %v1085 = vpop.permute.xlu0 %1084
        %s1087 = sor.u32 256, 32
        %1088 = vbcast.lane.b32.xlu0 %v1070, %s1087
        %v1089 = vpop.permute.xlu0 %1088
        %s1091 = sor.u32 256, 40
        %1092 = vbcast.lane.b32.xlu0 %v1070, %s1091
        %v1093 = vpop.permute.xlu0 %1092
        %s1095 = sor.u32 256, 48
        %1096 = vbcast.lane.b32.xlu0 %v1070, %s1095
        %v1097 = vpop.permute.xlu0 %1096
        %s1099 = sor.u32 256, 56
        %1100 = vbcast.lane.b32.xlu0 %v1070, %s1099
        %v1101 = vpop.permute.xlu0 %1100
        %s1103 = sor.u32 256, 64
        %1104 = vbcast.lane.b32.xlu0 %v1070, %s1103
        %v1105 = vpop.permute.xlu0 %1104
        %s1107 = sor.u32 256, 72
        %1108 = vbcast.lane.b32.xlu0 %v1070, %s1107
        %v1109 = vpop.permute.xlu0 %1108
        %s1111 = sor.u32 256, 80
        %1112 = vbcast.lane.b32.xlu0 %v1070, %s1111
        %v1113 = vpop.permute.xlu0 %1112
        %s1115 = sor.u32 256, 88
        %1116 = vbcast.lane.b32.xlu0 %v1070, %s1115
        %v1117 = vpop.permute.xlu0 %1116
        %s1119 = sor.u32 256, 96
        %1120 = vbcast.lane.b32.xlu0 %v1070, %s1119
        %v1121 = vpop.permute.xlu0 %1120
        %s1123 = sor.u32 256, 104
        %1124 = vbcast.lane.b32.xlu0 %v1070, %s1123
        %v1125 = vpop.permute.xlu0 %1124
        %s1127 = sor.u32 256, 112
        %1128 = vbcast.lane.b32.xlu0 %v1070, %s1127
        %v1129 = vpop.permute.xlu0 %1128
        %s1131 = sor.u32 256, 120
        %1132 = vbcast.lane.b32.xlu0 %v1070, %s1131
        %v1133 = vpop.permute.xlu0 %1132
        %vm1134 = vcmp.eq.s32.totalorder %v1073, %v170
        %vm1135 = vcmp.eq.s32.totalorder %v1077, %v170
        %vm1136 = vcmp.eq.s32.totalorder %v1081, %v170
        %vm1137 = vcmp.eq.s32.totalorder %v1085, %v170
        %vm1138 = vcmp.eq.s32.totalorder %v1089, %v170
        %vm1139 = vcmp.eq.s32.totalorder %v1093, %v170
        %vm1140 = vcmp.eq.s32.totalorder %v1097, %v170
        %vm1141 = vcmp.eq.s32.totalorder %v1101, %v170
        %vm1142 = vcmp.eq.s32.totalorder %v1105, %v170
        %vm1143 = vcmp.eq.s32.totalorder %v1109, %v170
        %vm1144 = vcmp.eq.s32.totalorder %v1113, %v170
        %vm1145 = vcmp.eq.s32.totalorder %v1117, %v170
        %vm1146 = vcmp.eq.s32.totalorder %v1121, %v170
        %vm1147 = vcmp.eq.s32.totalorder %v1125, %v170
        %vm1148 = vcmp.eq.s32.totalorder %v1129, %v170
        %vm1149 = vcmp.eq.s32.totalorder %v1133, %v170
        %v1150 = vsel %vm1134, 1, 0
        %v1151 = vsel %vm1135, 1, 0
        %v1152 = vsel %vm1136, 1, 0
        %v1153 = vsel %vm1137, 1, 0
        %v1154 = vsel %vm1138, 1, 0
        %v1155 = vsel %vm1139, 1, 0
        %v1156 = vsel %vm1140, 1, 0
        %v1157 = vsel %vm1141, 1, 0
        %v1158 = vsel %vm1142, 1, 0
        %v1159 = vsel %vm1143, 1, 0
        %v1160 = vsel %vm1144, 1, 0
        %v1161 = vsel %vm1145, 1, 0
        %v1162 = vsel %vm1146, 1, 0
        %v1163 = vsel %vm1147, 1, 0
        %v1164 = vsel %vm1148, 1, 0
        %v1165 = vsel %vm1149, 1, 0
        %v1166 = vcvt.s32.f32 %v1150
        %v1167 = vcvt.s32.f32 %v1151
        %v1168 = vcvt.s32.f32 %v1152
        %v1169 = vcvt.s32.f32 %v1153
        %v1170 = vcvt.s32.f32 %v1154
        %v1171 = vcvt.s32.f32 %v1155
        %v1172 = vcvt.s32.f32 %v1156
        %v1173 = vcvt.s32.f32 %v1157
        %v1174 = vcvt.s32.f32 %v1158
        %v1175 = vcvt.s32.f32 %v1159
        %v1176 = vcvt.s32.f32 %v1160
        %v1177 = vcvt.s32.f32 %v1161
        %v1178 = vcvt.s32.f32 %v1162
        %v1179 = vcvt.s32.f32 %v1163
        %v1180 = vcvt.s32.f32 %v1164
        %v1181 = vcvt.s32.f32 %v1165
        %v1182 = vpack.c.bf16 %v1167, %v1166
        %v1183 = vpack.c.bf16 %v1169, %v1168
        %v1184 = vpack.c.bf16 %v1171, %v1170
        %v1185 = vpack.c.bf16 %v1173, %v1172
        %v1186 = vpack.c.bf16 %v1175, %v1174
        %v1187 = vpack.c.bf16 %v1177, %v1176
        %v1188 = vpack.c.bf16 %v1179, %v1178
        %v1189 = vpack.c.bf16 %v1181, %v1180
        %1190 = vmatprep.subr.bf16.mxu0 0
        %1191 = vmatpush1.bf16.msra.mxu0 %v1182
        %1192 = vmatprep.subr.bf16.mxu0 0
        %1193 = vmatpush1.bf16.msra.mxu0 %v1183
        %1194 = vmatprep.subr.bf16.mxu0 0
        %1195 = vmatpush1.bf16.msra.mxu0 %v1184
        %1196 = vmatprep.subr.bf16.mxu0 0
        %1197 = vmatpush1.bf16.msra.mxu0 %v1185
        %1198 = vmatprep.subr.bf16.mxu0 0
        %1199 = vmatpush1.bf16.msra.mxu0 %v1186
        %1200 = vmatprep.subr.bf16.mxu0 0
        %1201 = vmatpush1.bf16.msra.mxu0 %v1187
        %1202 = vmatprep.subr.bf16.mxu0 0
        %1203 = vmatpush1.bf16.msra.mxu0 %v1188
        %1204 = vmatprep.subr.bf16.mxu0 0
        %1205 = vmatpush1.bf16.msra.mxu0 %v1189
        %1206 = vmatprep.subr.bf16.mxu0 0
        %1207 = vmatpush1.bf16.msra.mxu0 0
        %1208 = vmatprep.subr.bf16.mxu0 0
        %1209 = vmatpush1.bf16.msra.mxu0 0
        %1210 = vmatprep.subr.bf16.mxu0 0
        %1211 = vmatpush1.bf16.msra.mxu0 0
        %1212 = vmatprep.subr.bf16.mxu0 0
        %1213 = vmatpush1.bf16.msra.mxu0 0
        %1214 = vmatprep.subr.bf16.mxu0 0
        %1215 = vmatpush1.bf16.msra.mxu0 0
        %1216 = vmatprep.subr.bf16.mxu0 0
        %1217 = vmatpush1.bf16.msra.mxu0 0
        %1218 = vmatprep.subr.bf16.mxu0 0
        %1219 = vmatpush1.bf16.msra.mxu0 0
        %1220 = vmatprep.subr.bf16.mxu0 0
        %1221 = vmatpush1.bf16.msra.mxu0 0
        %1222 = vmatprep.mubr.bf16.mxu0 0
        %1223 = vmatmul.mubr.bf16.gmra.mrb[0].mxu0 1065369472
        %v1224 = vpop.f32.mrb[0].mxu0
        %v1225 = vadd.f32 0.0, %v1224
        %v1226 = vpop.f32.mrb[0].mxu0
        %v1227 = vpop.f32.mrb[0].mxu0
        %v1228 = vpop.f32.mrb[0].mxu0
        %1229 = vdwg.mxu0
        %v1230 = vadd.f32 %v1066, %v1225
        %v1231 = vlaneseq
        %v1232 = vshrl.u32 %v1231, 7
        %v1233 = vsub.s32 6, %v1232
        %v1234 = vrot.slane %v248, %v1233
        %1236 = vbcast.lane.b32.xlu0 %v1234, 256
        %v1237 = vpop.permute.xlu0 %1236
        %s1239 = sor.u32 256, 8
        %1240 = vbcast.lane.b32.xlu0 %v1234, %s1239
        %v1241 = vpop.permute.xlu0 %1240
        %s1243 = sor.u32 256, 16
        %1244 = vbcast.lane.b32.xlu0 %v1234, %s1243
        %v1245 = vpop.permute.xlu0 %1244
        %s1247 = sor.u32 256, 24
        %1248 = vbcast.lane.b32.xlu0 %v1234, %s1247
        %v1249 = vpop.permute.xlu0 %1248
        %s1251 = sor.u32 256, 32
        %1252 = vbcast.lane.b32.xlu0 %v1234, %s1251
        %v1253 = vpop.permute.xlu0 %1252
        %s1255 = sor.u32 256, 40
        %1256 = vbcast.lane.b32.xlu0 %v1234, %s1255
        %v1257 = vpop.permute.xlu0 %1256
        %s1259 = sor.u32 256, 48
        %1260 = vbcast.lane.b32.xlu0 %v1234, %s1259
        %v1261 = vpop.permute.xlu0 %1260
        %s1263 = sor.u32 256, 56
        %1264 = vbcast.lane.b32.xlu0 %v1234, %s1263
        %v1265 = vpop.permute.xlu0 %1264
        %s1267 = sor.u32 256, 64
        %1268 = vbcast.lane.b32.xlu0 %v1234, %s1267
        %v1269 = vpop.permute.xlu0 %1268
        %s1271 = sor.u32 256, 72
        %1272 = vbcast.lane.b32.xlu0 %v1234, %s1271
        %v1273 = vpop.permute.xlu0 %1272
        %s1275 = sor.u32 256, 80
        %1276 = vbcast.lane.b32.xlu0 %v1234, %s1275
        %v1277 = vpop.permute.xlu0 %1276
        %s1279 = sor.u32 256, 88
        %1280 = vbcast.lane.b32.xlu0 %v1234, %s1279
        %v1281 = vpop.permute.xlu0 %1280
        %s1283 = sor.u32 256, 96
        %1284 = vbcast.lane.b32.xlu0 %v1234, %s1283
        %v1285 = vpop.permute.xlu0 %1284
        %s1287 = sor.u32 256, 104
        %1288 = vbcast.lane.b32.xlu0 %v1234, %s1287
        %v1289 = vpop.permute.xlu0 %1288
        %s1291 = sor.u32 256, 112
        %1292 = vbcast.lane.b32.xlu0 %v1234, %s1291
        %v1293 = vpop.permute.xlu0 %1292
        %s1295 = sor.u32 256, 120
        %1296 = vbcast.lane.b32.xlu0 %v1234, %s1295
        %v1297 = vpop.permute.xlu0 %1296
        %vm1298 = vcmp.eq.s32.totalorder %v1237, %v170
        %vm1299 = vcmp.eq.s32.totalorder %v1241, %v170
        %vm1300 = vcmp.eq.s32.totalorder %v1245, %v170
        %vm1301 = vcmp.eq.s32.totalorder %v1249, %v170
        %vm1302 = vcmp.eq.s32.totalorder %v1253, %v170
        %vm1303 = vcmp.eq.s32.totalorder %v1257, %v170
        %vm1304 = vcmp.eq.s32.totalorder %v1261, %v170
        %vm1305 = vcmp.eq.s32.totalorder %v1265, %v170
        %vm1306 = vcmp.eq.s32.totalorder %v1269, %v170
        %vm1307 = vcmp.eq.s32.totalorder %v1273, %v170
        %vm1308 = vcmp.eq.s32.totalorder %v1277, %v170
        %vm1309 = vcmp.eq.s32.totalorder %v1281, %v170
        %vm1310 = vcmp.eq.s32.totalorder %v1285, %v170
        %vm1311 = vcmp.eq.s32.totalorder %v1289, %v170
        %vm1312 = vcmp.eq.s32.totalorder %v1293, %v170
        %vm1313 = vcmp.eq.s32.totalorder %v1297, %v170
        %v1314 = vsel %vm1298, 1, 0
        %v1315 = vsel %vm1299, 1, 0
        %v1316 = vsel %vm1300, 1, 0
        %v1317 = vsel %vm1301, 1, 0
        %v1318 = vsel %vm1302, 1, 0
        %v1319 = vsel %vm1303, 1, 0
        %v1320 = vsel %vm1304, 1, 0
        %v1321 = vsel %vm1305, 1, 0
        %v1322 = vsel %vm1306, 1, 0
        %v1323 = vsel %vm1307, 1, 0
        %v1324 = vsel %vm1308, 1, 0
        %v1325 = vsel %vm1309, 1, 0
        %v1326 = vsel %vm1310, 1, 0
        %v1327 = vsel %vm1311, 1, 0
        %v1328 = vsel %vm1312, 1, 0
        %v1329 = vsel %vm1313, 1, 0
        %v1330 = vcvt.s32.f32 %v1314
        %v1331 = vcvt.s32.f32 %v1315
        %v1332 = vcvt.s32.f32 %v1316
        %v1333 = vcvt.s32.f32 %v1317
        %v1334 = vcvt.s32.f32 %v1318
        %v1335 = vcvt.s32.f32 %v1319
        %v1336 = vcvt.s32.f32 %v1320
        %v1337 = vcvt.s32.f32 %v1321
        %v1338 = vcvt.s32.f32 %v1322
        %v1339 = vcvt.s32.f32 %v1323
        %v1340 = vcvt.s32.f32 %v1324
        %v1341 = vcvt.s32.f32 %v1325
        %v1342 = vcvt.s32.f32 %v1326
        %v1343 = vcvt.s32.f32 %v1327
        %v1344 = vcvt.s32.f32 %v1328
        %v1345 = vcvt.s32.f32 %v1329
        %v1346 = vpack.c.bf16 %v1331, %v1330
        %v1347 = vpack.c.bf16 %v1333, %v1332
        %v1348 = vpack.c.bf16 %v1335, %v1334
        %v1349 = vpack.c.bf16 %v1337, %v1336
        %v1350 = vpack.c.bf16 %v1339, %v1338
        %v1351 = vpack.c.bf16 %v1341, %v1340
        %v1352 = vpack.c.bf16 %v1343, %v1342
        %v1353 = vpack.c.bf16 %v1345, %v1344
        %1354 = vmatprep.subr.bf16.mxu0 0
        %1355 = vmatpush1.bf16.msra.mxu0 %v1346
        %1356 = vmatprep.subr.bf16.mxu0 0
        %1357 = vmatpush1.bf16.msra.mxu0 %v1347
        %1358 = vmatprep.subr.bf16.mxu0 0
        %1359 = vmatpush1.bf16.msra.mxu0 %v1348
        %1360 = vmatprep.subr.bf16.mxu0 0
        %1361 = vmatpush1.bf16.msra.mxu0 %v1349
        %1362 = vmatprep.subr.bf16.mxu0 0
        %1363 = vmatpush1.bf16.msra.mxu0 %v1350
        %1364 = vmatprep.subr.bf16.mxu0 0
        %1365 = vmatpush1.bf16.msra.mxu0 %v1351
        %1366 = vmatprep.subr.bf16.mxu0 0
        %1367 = vmatpush1.bf16.msra.mxu0 %v1352
        %1368 = vmatprep.subr.bf16.mxu0 0
        %1369 = vmatpush1.bf16.msra.mxu0 %v1353
        %1370 = vmatprep.subr.bf16.mxu0 0
        %1371 = vmatpush1.bf16.msra.mxu0 0
        %1372 = vmatprep.subr.bf16.mxu0 0
        %1373 = vmatpush1.bf16.msra.mxu0 0
        %1374 = vmatprep.subr.bf16.mxu0 0
        %1375 = vmatpush1.bf16.msra.mxu0 0
        %1376 = vmatprep.subr.bf16.mxu0 0
        %1377 = vmatpush1.bf16.msra.mxu0 0
        %1378 = vmatprep.subr.bf16.mxu0 0
        %1379 = vmatpush1.bf16.msra.mxu0 0
        %1380 = vmatprep.subr.bf16.mxu0 0
        %1381 = vmatpush1.bf16.msra.mxu0 0
        %1382 = vmatprep.subr.bf16.mxu0 0
        %1383 = vmatpush1.bf16.msra.mxu0 0
        %1384 = vmatprep.subr.bf16.mxu0 0
        %1385 = vmatpush1.bf16.msra.mxu0 0
        %1386 = vmatprep.mubr.bf16.mxu0 0
        %1387 = vmatmul.mubr.bf16.gmra.mrb[0].mxu0 1065369472
        %v1388 = vpop.f32.mrb[0].mxu0
        %v1389 = vadd.f32 0.0, %v1388
        %v1390 = vpop.f32.mrb[0].mxu0
        %v1391 = vpop.f32.mrb[0].mxu0
        %v1392 = vpop.f32.mrb[0].mxu0
        %1393 = vdwg.mxu0
        %v1394 = vadd.f32 %v1230, %v1389
        %v1395 = vlaneseq
        %v1396 = vshrl.u32 %v1395, 7
        %v1397 = vsub.s32 7, %v1396
        %v1398 = vrot.slane %v248, %v1397
        %1400 = vbcast.lane.b32.xlu0 %v1398, 256
        %v1401 = vpop.permute.xlu0 %1400
        %s1403 = sor.u32 256, 8
        %1404 = vbcast.lane.b32.xlu0 %v1398, %s1403
        %v1405 = vpop.permute.xlu0 %1404
        %s1407 = sor.u32 256, 16
        %1408 = vbcast.lane.b32.xlu0 %v1398, %s1407
        %v1409 = vpop.permute.xlu0 %1408
        %s1411 = sor.u32 256, 24
        %1412 = vbcast.lane.b32.xlu0 %v1398, %s1411
        %v1413 = vpop.permute.xlu0 %1412
        %s1415 = sor.u32 256, 32
        %1416 = vbcast.lane.b32.xlu0 %v1398, %s1415
        %v1417 = vpop.permute.xlu0 %1416
        %s1419 = sor.u32 256, 40
        %1420 = vbcast.lane.b32.xlu0 %v1398, %s1419
        %v1421 = vpop.permute.xlu0 %1420
        %s1423 = sor.u32 256, 48
        %1424 = vbcast.lane.b32.xlu0 %v1398, %s1423
        %v1425 = vpop.permute.xlu0 %1424
        %s1427 = sor.u32 256, 56
        %1428 = vbcast.lane.b32.xlu0 %v1398, %s1427
        %v1429 = vpop.permute.xlu0 %1428
        %s1431 = sor.u32 256, 64
        %1432 = vbcast.lane.b32.xlu0 %v1398, %s1431
        %v1433 = vpop.permute.xlu0 %1432
        %s1435 = sor.u32 256, 72
        %1436 = vbcast.lane.b32.xlu0 %v1398, %s1435
        %v1437 = vpop.permute.xlu0 %1436
        %s1439 = sor.u32 256, 80
        %1440 = vbcast.lane.b32.xlu0 %v1398, %s1439
        %v1441 = vpop.permute.xlu0 %1440
        %s1443 = sor.u32 256, 88
        %1444 = vbcast.lane.b32.xlu0 %v1398, %s1443
        %v1445 = vpop.permute.xlu0 %1444
        %s1447 = sor.u32 256, 96
        %1448 = vbcast.lane.b32.xlu0 %v1398, %s1447
        %v1449 = vpop.permute.xlu0 %1448
        %s1451 = sor.u32 256, 104
        %1452 = vbcast.lane.b32.xlu0 %v1398, %s1451
        %v1453 = vpop.permute.xlu0 %1452
        %s1455 = sor.u32 256, 112
        %1456 = vbcast.lane.b32.xlu0 %v1398, %s1455
        %v1457 = vpop.permute.xlu0 %1456
        %s1459 = sor.u32 256, 120
        %1460 = vbcast.lane.b32.xlu0 %v1398, %s1459
        %v1461 = vpop.permute.xlu0 %1460
        %vm1462 = vcmp.eq.s32.totalorder %v1401, %v170
        %vm1463 = vcmp.eq.s32.totalorder %v1405, %v170
        %vm1464 = vcmp.eq.s32.totalorder %v1409, %v170
        %vm1465 = vcmp.eq.s32.totalorder %v1413, %v170
        %vm1466 = vcmp.eq.s32.totalorder %v1417, %v170
        %vm1467 = vcmp.eq.s32.totalorder %v1421, %v170
        %vm1468 = vcmp.eq.s32.totalorder %v1425, %v170
        %vm1469 = vcmp.eq.s32.totalorder %v1429, %v170
        %vm1470 = vcmp.eq.s32.totalorder %v1433, %v170
        %vm1471 = vcmp.eq.s32.totalorder %v1437, %v170
        %vm1472 = vcmp.eq.s32.totalorder %v1441, %v170
        %vm1473 = vcmp.eq.s32.totalorder %v1445, %v170
        %vm1474 = vcmp.eq.s32.totalorder %v1449, %v170
        %vm1475 = vcmp.eq.s32.totalorder %v1453, %v170
        %vm1476 = vcmp.eq.s32.totalorder %v1457, %v170
        %vm1477 = vcmp.eq.s32.totalorder %v1461, %v170
        %v1478 = vsel %vm1462, 1, 0
        %v1479 = vsel %vm1463, 1, 0
        %v1480 = vsel %vm1464, 1, 0
        %v1481 = vsel %vm1465, 1, 0
        %v1482 = vsel %vm1466, 1, 0
        %v1483 = vsel %vm1467, 1, 0
        %v1484 = vsel %vm1468, 1, 0
        %v1485 = vsel %vm1469, 1, 0
        %v1486 = vsel %vm1470, 1, 0
        %v1487 = vsel %vm1471, 1, 0
        %v1488 = vsel %vm1472, 1, 0
        %v1489 = vsel %vm1473, 1, 0
        %v1490 = vsel %vm1474, 1, 0
        %v1491 = vsel %vm1475, 1, 0
        %v1492 = vsel %vm1476, 1, 0
        %v1493 = vsel %vm1477, 1, 0
        %v1494 = vcvt.s32.f32 %v1478
        %v1495 = vcvt.s32.f32 %v1479
        %v1496 = vcvt.s32.f32 %v1480
        %v1497 = vcvt.s32.f32 %v1481
        %v1498 = vcvt.s32.f32 %v1482
        %v1499 = vcvt.s32.f32 %v1483
        %v1500 = vcvt.s32.f32 %v1484
        %v1501 = vcvt.s32.f32 %v1485
        %v1502 = vcvt.s32.f32 %v1486
        %v1503 = vcvt.s32.f32 %v1487
        %v1504 = vcvt.s32.f32 %v1488
        %v1505 = vcvt.s32.f32 %v1489
        %v1506 = vcvt.s32.f32 %v1490
        %v1507 = vcvt.s32.f32 %v1491
        %v1508 = vcvt.s32.f32 %v1492
        %v1509 = vcvt.s32.f32 %v1493
        %v1510 = vpack.c.bf16 %v1495, %v1494
        %v1511 = vpack.c.bf16 %v1497, %v1496
        %v1512 = vpack.c.bf16 %v1499, %v1498
        %v1513 = vpack.c.bf16 %v1501, %v1500
        %v1514 = vpack.c.bf16 %v1503, %v1502
        %v1515 = vpack.c.bf16 %v1505, %v1504
        %v1516 = vpack.c.bf16 %v1507, %v1506
        %v1517 = vpack.c.bf16 %v1509, %v1508
        %1518 = vmatprep.subr.bf16.mxu0 0
        %1519 = vmatpush1.bf16.msra.mxu0 %v1510
        %1520 = vmatprep.subr.bf16.mxu0 0
        %1521 = vmatpush1.bf16.msra.mxu0 %v1511
        %1522 = vmatprep.subr.bf16.mxu0 0
        %1523 = vmatpush1.bf16.msra.mxu0 %v1512
        %1524 = vmatprep.subr.bf16.mxu0 0
        %1525 = vmatpush1.bf16.msra.mxu0 %v1513
        %1526 = vmatprep.subr.bf16.mxu0 0
        %1527 = vmatpush1.bf16.msra.mxu0 %v1514
        %1528 = vmatprep.subr.bf16.mxu0 0
        %1529 = vmatpush1.bf16.msra.mxu0 %v1515
        %1530 = vmatprep.subr.bf16.mxu0 0
        %1531 = vmatpush1.bf16.msra.mxu0 %v1516
        %1532 = vmatprep.subr.bf16.mxu0 0
        %1533 = vmatpush1.bf16.msra.mxu0 %v1517
        %1534 = vmatprep.subr.bf16.mxu0 0
        %1535 = vmatpush1.bf16.msra.mxu0 0
        %1536 = vmatprep.subr.bf16.mxu0 0
        %1537 = vmatpush1.bf16.msra.mxu0 0
        %1538 = vmatprep.subr.bf16.mxu0 0
        %1539 = vmatpush1.bf16.msra.mxu0 0
        %1540 = vmatprep.subr.bf16.mxu0 0
        %1541 = vmatpush1.bf16.msra.mxu0 0
        %1542 = vmatprep.subr.bf16.mxu0 0
        %1543 = vmatpush1.bf16.msra.mxu0 0
        %1544 = vmatprep.subr.bf16.mxu0 0
        %1545 = vmatpush1.bf16.msra.mxu0 0
        %1546 = vmatprep.subr.bf16.mxu0 0
        %1547 = vmatpush1.bf16.msra.mxu0 0
        %1548 = vmatprep.subr.bf16.mxu0 0
        %1549 = vmatpush1.bf16.msra.mxu0 0
        %1550 = vmatprep.mubr.bf16.mxu0 0
        %1551 = vmatmul.mubr.bf16.gmra.mrb[0].mxu0 1065369472
        %v1552 = vpop.f32.mrb[0].mxu0
        %v1553 = vadd.f32 0.0, %v1552
        %v1554 = vpop.f32.mrb[0].mxu0
        %v1555 = vpop.f32.mrb[0].mxu0
        %v1556 = vpop.f32.mrb[0].mxu0
        %1557 = vdwg.mxu0
        %v1558 = vadd.f32 %v1394, %v1553
        %v1559 = vld [vmem:[%s160] sm:$0x1]
        %v1560 = vcvt.f32.s32.to.zero.pseudo %v1558
        %v1561 = vadd.s32 %v1559, %v1560
        %1562 = vst [vmem:[%s160] sm:$0x1] %v1561
        %s1563 = sand.u32 %s77, 1
        %s1564 = scalar_lea.sflag [#allocation4], %s1563
        %s1565 = sand.u32 %s77, 1
        %s1566 = scalar_lea.vmem [#allocation5], %s1565
        // Predicated region
        $region33: #{tpu_custom_call.1} parent=23 // pred_check
          %p1567 = pneg %p87
        $region34: #{tpu_custom_call.1} parent=23 // pred_check_branch
          %1569 = sbr.rel (%p1567) target = $region36
        $region35: #{tpu_custom_call.1} parent=23 // pred_region
          %s1571 = ssub.s32 16, 16
          %1572 = vsyncadd %s1564, %s1571
          %s1573 = smul.addr %s23, 2
          %s1574 = sadd.s32 %s24, %s1573
          %s1575 = smul.addr %s1574, 16
          %s1576 = scalar_lea.hbm %s1, %s1575
          %s1578 = sshll.u32 %s1566, 4
          %s1579 = int_to_ptr.vmem [resolvable:$true] %s1578
          %1581 = dma.vmem_to_hbm [thread:$0]  %s1579, 16, %s1576, %s1564
        $region36: #{tpu_custom_call.1} parent=23 // pred_fallthru
          _
      $region24: #{tpu_custom_call.1} parent=5 // pred_fallthru
        _
      %p1582 = scmp.le.s32.totalorder 2, %s13
      // Predicated region
      $region37: #{tpu_custom_call.1} parent=5 // pred_check
        %p1583 = pneg %p1582
      $region38: #{tpu_custom_call.1} parent=5 // pred_check_branch
        %1585 = sbr.rel (%p1583) target = $region40
      $region39: #{tpu_custom_call.1} parent=5 // pred_region
        %s1586 = ssub.s32 %s13, 2
        // Predicated region
        $region41: #{tpu_custom_call.1} parent=39 // pred_check
          %p1587 = pneg %p93
        $region42: #{tpu_custom_call.1} parent=39 // pred_check_branch
          %1589 = sbr.rel (%p1587) target = $region44
        $region43: #{tpu_custom_call.1} parent=39 // pred_region
          %s1590 = sand.u32 %s78, 1
          %s1591 = scalar_lea.sflag [#allocation4], %s1590
          %s1592 = sand.u32 %s78, 1
          %s1593 = scalar_lea.vmem [#allocation5], %s1592
          %1594 = dma.done %s1591, 16
        $region44: #{tpu_custom_call.1} parent=39 // pred_fallthru
          _
      $region40: #{tpu_custom_call.1} parent=5 // pred_fallthru
        _
    $region6: #{tpu_custom_call.1} parent=1 // loop_footer
      %s17 = sadd.s32 1, %s13
    $region7: #{tpu_custom_call.1} parent=1 // loop_footer_branch
      %12 = sbr.rel target = $region3
    $region8: #{tpu_custom_call.1} parent=1 // loop_exit
      _
    %1595 = vsyncpa [#allocation3], 1
    %s1596 = scalar_lea.sflag [#allocation3], 1
    %1597 = vsyncpa %s1596, 1
    %1598 = vsyncpa [#allocation4], 1
    %s1599 = scalar_lea.sflag [#allocation4], 1
    %1600 = vsyncpa %s1599, 1

</llo_original>
